<compile_context>
chip_gen: v5e
topology: v5e:2x2
jax: 0.10.0
libtpu: 0.0.40
codegen_flags: <defaults>
</compile_context>

<pallas_src>
import functools

import jax
import jax.numpy as jnp
from jax.experimental import pallas as pl
from jax.experimental.pallas import tpu as pltpu

_SUBLANE = 8  # f32 sublane tile height


# ----------------------------------------------------------------------------
# Fused kernel: all LSTM layers + dense head, one batch-block per grid step.
# ----------------------------------------------------------------------------
def _lstmad_fused_kernel(*refs, num_layers, seq_len, hidden):
    T, H = seq_len, hidden

    x_ref = refs[0]                                   # (T, BB, in_dim)
    layer_refs = refs[1:1 + 3 * num_layers]           # (w_ih_t, w_hh_t, b) * L
    wd_ref = refs[1 + 3 * num_layers]                 # (T, H, H)
    bd_ref = refs[2 + 3 * num_layers]                 # (1, H)
    out_ref = refs[3 + 3 * num_layers]                # (BB, H)
    BB = out_ref.shape[0]

    # Per-timestep input slabs: whole leading-index reads (clean tile access).
    seq = [x_ref[t] for t in range(T)]                # T x (BB, in_dim)

    for layer in range(num_layers):
        wih = layer_refs[3 * layer + 0][...]           # (in_dim, 4H)
        whh = layer_refs[3 * layer + 1][...]           # (H, 4H), resident for loop
        b = layer_refs[3 * layer + 2][...]             # (1, 4H)

        # Hoisted input projection: no dependence on h/c, so these T MXU dots
        # sit off the serial recurrent critical path.
        xproj = [
            jnp.dot(s, wih, preferred_element_type=jnp.float32) + b for s in seq
        ]                                              # T x (BB, 4H)

        h = jnp.zeros((BB, H), jnp.float32)
        c = jnp.zeros((BB, H), jnp.float32)
        outs = []
        for t in range(T):                             # static unroll, T small
            # Only the recurrent matmul is on the serial critical path.
            gates = xproj[t] + jnp.dot(
                h, whh, preferred_element_type=jnp.float32)   # (BB, 4H)

            # Two full-lane-vreg transcendentals (4H == 128 lanes), then slice.
            sg = jax.nn.sigmoid(gates)
            tg = jnp.tanh(gates)
            i = sg[:, 0 * H:1 * H]
            f = sg[:, 1 * H:2 * H]
            g = tg[:, 2 * H:3 * H]
            o = sg[:, 3 * H:4 * H]

            c = f * c + i * g
            h = o * jnp.tanh(c)
            outs.append(h)                             # carried as values (vregs)
        seq = outs                                     # next layer's input

    # Dense-head epilogue (off the recurrence):
    #   out = concat_t(h_t) @ Wd + bd  ==  sum_t h_t @ Wd[t]
    acc = jnp.zeros((BB, H), jnp.float32)
    for t in range(T):
        acc = acc + jnp.dot(
            seq[t], wd_ref[t], preferred_element_type=jnp.float32)
    out_ref[...] = acc + bd_ref[...]


# ----------------------------------------------------------------------------
# Parameters (PyTorch nn.LSTM / nn.Linear layout, pre-transposed for the MXU)
# ----------------------------------------------------------------------------
def init_params(key, input_size, lstm_layers, window_size, prediction_window_size):
    d = input_size
    H = d * prediction_window_size
    params = {"lstm": []}
    k = key
    for layer in range(lstm_layers):
        in_dim = d if layer == 0 else H
        k, k1, k2, k3, k4 = jax.random.split(k, 5)
        scale = 1.0 / jnp.sqrt(H)
        w_ih = jax.random.uniform(k1, (4 * H, in_dim), jnp.float32, -scale, scale)
        w_hh = jax.random.uniform(k2, (4 * H, H), jnp.float32, -scale, scale)
        b_ih = jax.random.uniform(k3, (4 * H,), jnp.float32, -scale, scale)
        b_hh = jax.random.uniform(k4, (4 * H,), jnp.float32, -scale, scale)
        params["lstm"].append({
            "w_ih_t": w_ih.T,                       # (in_dim, 4H)
            "w_hh_t": w_hh.T,                       # (H, 4H)
            "b": (b_ih + b_hh).reshape(1, 4 * H),   # (1, 4H)
        })
    in_f = window_size * H
    k, k1, k2 = jax.random.split(k, 3)
    scale = 1.0 / jnp.sqrt(in_f)
    w_dense = jax.random.uniform(k1, (H, in_f), jnp.float32, -scale, scale)
    b_dense = jax.random.uniform(k2, (H,), jnp.float32, -scale, scale)
    params["dense_w_t"] = w_dense.T          # (in_f, H)  (feature idx = t*H + j)
    params["dense_b"] = b_dense.reshape(1, H)
    return params


# ----------------------------------------------------------------------------
# Wrapper: layout plumbing + single pallas_call
# ----------------------------------------------------------------------------
@jax.jit
def lstmad_forward(params, x):
    """x: (B, window_size, d) batch_first, as in the PyTorch module."""
    B, T, d = x.shape
    lstm_params = params["lstm"]
    L = len(lstm_params)
    H = lstm_params[0]["w_hh_t"].shape[0]

    BB = _SUBLANE
    B_pad = ((B + BB - 1) // BB) * BB

    # Time-major and zero-padded batch so every per-step slab is tile-aligned.
    x_tm = jnp.transpose(x, (1, 0, 2)).astype(jnp.float32)        # (T, B, d)
    x_tm = jnp.pad(x_tm, ((0, 0), (0, B_pad - B), (0, 0)))        # (T, B_pad, d)

    wd3 = params["dense_w_t"].reshape(T, H, H)   # Wd[t, j, o] = dense_w_t[t*H+j, o]
    bd = params["dense_b"]

    inputs = [x_tm]
    in_specs = [pl.BlockSpec((T, BB, d), lambda b: (0, b, 0))]
    for lp in lstm_params:
        for name in ("w_ih_t", "w_hh_t", "b"):
            arr = lp[name]
            inputs.append(arr)
            in_specs.append(
                pl.BlockSpec(arr.shape, lambda b, _n=arr.ndim: (0,) * _n))
    inputs.append(wd3)
    in_specs.append(pl.BlockSpec((T, H, H), lambda b: (0, 0, 0)))
    inputs.append(bd)
    in_specs.append(pl.BlockSpec((1, H), lambda b: (0, 0)))

    kernel = functools.partial(
        _lstmad_fused_kernel, num_layers=L, seq_len=T, hidden=H)

    out = pl.pallas_call(
        kernel,
        out_shape=jax.ShapeDtypeStruct((B_pad, H), jnp.float32),
        grid=(B_pad // BB,),
        in_specs=in_specs,
        out_specs=pl.BlockSpec((BB, H), lambda b: (b, 0)),
        # Batch blocks are independent -> shard across v7x's two TensorCores.
        compiler_params=pltpu.CompilerParams(dimension_semantics=("parallel",)),
    )(*inputs)

    return out[:B]


# ----------------------------------------------------------------------------
# Pure-JAX reference (correctness sanity check)
# ----------------------------------------------------------------------------
def lstmad_reference(params, x):
    B, T, _ = x.shape
    h_seq = x.astype(jnp.float32)
    for lp in params["lstm"]:
        H = lp["w_hh_t"].shape[0]
        h = jnp.zeros((B, H), jnp.float32)
        c = jnp.zeros((B, H), jnp.float32)
        outs = []
        for t in range(T):
            gates = h_seq[:, t, :] @ lp["w_ih_t"] + h @ lp["w_hh_t"] + lp["b"]
            i = jax.nn.sigmoid(gates[:, 0 * H:1 * H])
            f = jax.nn.sigmoid(gates[:, 1 * H:2 * H])
            g = jnp.tanh(gates[:, 2 * H:3 * H])
            o = jax.nn.sigmoid(gates[:, 3 * H:4 * H])
            c = f * c + i * g
            h = o * jnp.tanh(c)
            outs.append(h)
        h_seq = jnp.stack(outs, axis=1)
    flat = h_seq.reshape(B, -1)
    return flat @ params["dense_w_t"] + params["dense_b"]


if __name__ == "__main__":
    # Shapes consistent with the module:
    # input_size d=4, lstm_layers=2, window_size=8, prediction_window_size l=8
    # -> hidden H = d*l = 32, dense in = window*H = 256, dense out = 32
    d, lstm_layers, window_size, l = 4, 2, 8, 8
    batch = 2

    key = jax.random.PRNGKey(0)
    key, pk, xk = jax.random.split(key, 3)
    params = init_params(pk, d, lstm_layers, window_size, l)
    x = jax.random.normal(xk, (batch, window_size, d), jnp.float32)

    y = lstmad_forward(params, x)
    y = jax.block_until_ready(y)

    y_ref = lstmad_reference(params, x)
    assert y.shape == (batch, d * l), y.shape
    assert jnp.allclose(y, y_ref, atol=1e-4, rtol=1e-4), "mismatch vs reference"

    print("KERNEL_OK")
</pallas_src>

<mosaic_0001>
module attributes {stable_mosaic.version = 11 : i64} {
  func.func @_lstmad_fused_kernel(%arg0: i32, %arg1: memref<8x8x4xf32, #tpu.memory_space<vmem>>, %arg2: memref<4x128xf32, #tpu.memory_space<vmem>>, %arg3: memref<32x128xf32, #tpu.memory_space<vmem>>, %arg4: memref<1x128xf32, #tpu.memory_space<vmem>>, %arg5: memref<32x128xf32, #tpu.memory_space<vmem>>, %arg6: memref<32x128xf32, #tpu.memory_space<vmem>>, %arg7: memref<1x128xf32, #tpu.memory_space<vmem>>, %arg8: memref<8x32x32xf32, #tpu.memory_space<vmem>>, %arg9: memref<1x32xf32, #tpu.memory_space<vmem>>, %arg10: memref<8x32xf32, #tpu.memory_space<vmem>>) attributes {dimension_semantics = [#tpu.dimension_semantics<parallel>], iteration_bounds = array<i64: 1>, scalar_prefetch = 0 : i64, scratch_operands = 0 : i64, tpu.core_type = #tpu.core_type<tc>, window_params = [{transform_indices = @transform_0, window_bounds = array<i64: 8, 8, 4>}, {pipeline_mode = #tpu.pipeline_mode<synchronous>, transform_indices = @transform_1, window_bounds = array<i64: 4, 128>}, {pipeline_mode = #tpu.pipeline_mode<synchronous>, transform_indices = @transform_2, window_bounds = array<i64: 32, 128>}, {pipeline_mode = #tpu.pipeline_mode<synchronous>, transform_indices = @transform_3, window_bounds = array<i64: 1, 128>}, {pipeline_mode = #tpu.pipeline_mode<synchronous>, transform_indices = @transform_4, window_bounds = array<i64: 32, 128>}, {pipeline_mode = #tpu.pipeline_mode<synchronous>, transform_indices = @transform_5, window_bounds = array<i64: 32, 128>}, {pipeline_mode = #tpu.pipeline_mode<synchronous>, transform_indices = @transform_6, window_bounds = array<i64: 1, 128>}, {pipeline_mode = #tpu.pipeline_mode<synchronous>, transform_indices = @transform_7, window_bounds = array<i64: 8, 32, 32>}, {pipeline_mode = #tpu.pipeline_mode<synchronous>, transform_indices = @transform_8, window_bounds = array<i64: 1, 32>}, {transform_indices = @transform_9, window_bounds = array<i64: 8, 32>}]} {
    %c0 = arith.constant 0 : index
    %c0_0 = arith.constant 0 : index
    %c0_1 = arith.constant 0 : index
    %0 = vector.load %arg1[%c0, %c0_0, %c0_1] : memref<8x8x4xf32, #tpu.memory_space<vmem>>, vector<1x8x4xf32>
    %1 = vector.shape_cast %0 : vector<1x8x4xf32> to vector<8x4xf32>
    %c1 = arith.constant 1 : index
    %c0_2 = arith.constant 0 : index
    %c0_3 = arith.constant 0 : index
    %2 = vector.load %arg1[%c1, %c0_2, %c0_3] : memref<8x8x4xf32, #tpu.memory_space<vmem>>, vector<1x8x4xf32>
    %3 = vector.shape_cast %2 : vector<1x8x4xf32> to vector<8x4xf32>
    %c2 = arith.constant 2 : index
    %c0_4 = arith.constant 0 : index
    %c0_5 = arith.constant 0 : index
    %4 = vector.load %arg1[%c2, %c0_4, %c0_5] : memref<8x8x4xf32, #tpu.memory_space<vmem>>, vector<1x8x4xf32>
    %5 = vector.shape_cast %4 : vector<1x8x4xf32> to vector<8x4xf32>
    %c3 = arith.constant 3 : index
    %c0_6 = arith.constant 0 : index
    %c0_7 = arith.constant 0 : index
    %6 = vector.load %arg1[%c3, %c0_6, %c0_7] : memref<8x8x4xf32, #tpu.memory_space<vmem>>, vector<1x8x4xf32>
    %7 = vector.shape_cast %6 : vector<1x8x4xf32> to vector<8x4xf32>
    %c4 = arith.constant 4 : index
    %c0_8 = arith.constant 0 : index
    %c0_9 = arith.constant 0 : index
    %8 = vector.load %arg1[%c4, %c0_8, %c0_9] : memref<8x8x4xf32, #tpu.memory_space<vmem>>, vector<1x8x4xf32>
    %9 = vector.shape_cast %8 : vector<1x8x4xf32> to vector<8x4xf32>
    %c5 = arith.constant 5 : index
    %c0_10 = arith.constant 0 : index
    %c0_11 = arith.constant 0 : index
    %10 = vector.load %arg1[%c5, %c0_10, %c0_11] : memref<8x8x4xf32, #tpu.memory_space<vmem>>, vector<1x8x4xf32>
    %11 = vector.shape_cast %10 : vector<1x8x4xf32> to vector<8x4xf32>
    %c6 = arith.constant 6 : index
    %c0_12 = arith.constant 0 : index
    %c0_13 = arith.constant 0 : index
    %12 = vector.load %arg1[%c6, %c0_12, %c0_13] : memref<8x8x4xf32, #tpu.memory_space<vmem>>, vector<1x8x4xf32>
    %13 = vector.shape_cast %12 : vector<1x8x4xf32> to vector<8x4xf32>
    %c7 = arith.constant 7 : index
    %c0_14 = arith.constant 0 : index
    %c0_15 = arith.constant 0 : index
    %14 = vector.load %arg1[%c7, %c0_14, %c0_15] : memref<8x8x4xf32, #tpu.memory_space<vmem>>, vector<1x8x4xf32>
    %15 = vector.shape_cast %14 : vector<1x8x4xf32> to vector<8x4xf32>
    %c0_16 = arith.constant 0 : index
    %c0_17 = arith.constant 0 : index
    %16 = vector.load %arg2[%c0_16, %c0_17] : memref<4x128xf32, #tpu.memory_space<vmem>>, vector<4x128xf32>
    %c0_18 = arith.constant 0 : index
    %c0_19 = arith.constant 0 : index
    %17 = vector.load %arg3[%c0_18, %c0_19] : memref<32x128xf32, #tpu.memory_space<vmem>>, vector<32x128xf32>
    %c0_20 = arith.constant 0 : index
    %c0_21 = arith.constant 0 : index
    %18 = vector.load %arg4[%c0_20, %c0_21] : memref<1x128xf32, #tpu.memory_space<vmem>>, vector<1x128xf32>
    %cst = arith.constant dense<0.000000e+00> : vector<8x128xf32>
    %19 = tpu.matmul %1, %16, %cst {dimension_numbers = #tpu.dot_dimension_numbers<[1], [0], [0], [1], [0, 0, 1, 1], [], []>} : vector<8x4xf32>, vector<4x128xf32>, vector<8x128xf32> -> vector<8x128xf32>
    %20 = vector.broadcast %18 : vector<1x128xf32> to vector<8x128xf32>
    %21 = arith.addf %19, %20 : vector<8x128xf32>
    %cst_22 = arith.constant dense<0.000000e+00> : vector<8x128xf32>
    %22 = tpu.matmul %3, %16, %cst_22 {dimension_numbers = #tpu.dot_dimension_numbers<[1], [0], [0], [1], [0, 0, 1, 1], [], []>} : vector<8x4xf32>, vector<4x128xf32>, vector<8x128xf32> -> vector<8x128xf32>
    %23 = vector.broadcast %18 : vector<1x128xf32> to vector<8x128xf32>
    %24 = arith.addf %22, %23 : vector<8x128xf32>
    %cst_23 = arith.constant dense<0.000000e+00> : vector<8x128xf32>
    %25 = tpu.matmul %5, %16, %cst_23 {dimension_numbers = #tpu.dot_dimension_numbers<[1], [0], [0], [1], [0, 0, 1, 1], [], []>} : vector<8x4xf32>, vector<4x128xf32>, vector<8x128xf32> -> vector<8x128xf32>
    %26 = vector.broadcast %18 : vector<1x128xf32> to vector<8x128xf32>
    %27 = arith.addf %25, %26 : vector<8x128xf32>
    %cst_24 = arith.constant dense<0.000000e+00> : vector<8x128xf32>
    %28 = tpu.matmul %7, %16, %cst_24 {dimension_numbers = #tpu.dot_dimension_numbers<[1], [0], [0], [1], [0, 0, 1, 1], [], []>} : vector<8x4xf32>, vector<4x128xf32>, vector<8x128xf32> -> vector<8x128xf32>
    %29 = vector.broadcast %18 : vector<1x128xf32> to vector<8x128xf32>
    %30 = arith.addf %28, %29 : vector<8x128xf32>
    %cst_25 = arith.constant dense<0.000000e+00> : vector<8x128xf32>
    %31 = tpu.matmul %9, %16, %cst_25 {dimension_numbers = #tpu.dot_dimension_numbers<[1], [0], [0], [1], [0, 0, 1, 1], [], []>} : vector<8x4xf32>, vector<4x128xf32>, vector<8x128xf32> -> vector<8x128xf32>
    %32 = vector.broadcast %18 : vector<1x128xf32> to vector<8x128xf32>
    %33 = arith.addf %31, %32 : vector<8x128xf32>
    %cst_26 = arith.constant dense<0.000000e+00> : vector<8x128xf32>
    %34 = tpu.matmul %11, %16, %cst_26 {dimension_numbers = #tpu.dot_dimension_numbers<[1], [0], [0], [1], [0, 0, 1, 1], [], []>} : vector<8x4xf32>, vector<4x128xf32>, vector<8x128xf32> -> vector<8x128xf32>
    %35 = vector.broadcast %18 : vector<1x128xf32> to vector<8x128xf32>
    %36 = arith.addf %34, %35 : vector<8x128xf32>
    %cst_27 = arith.constant dense<0.000000e+00> : vector<8x128xf32>
    %37 = tpu.matmul %13, %16, %cst_27 {dimension_numbers = #tpu.dot_dimension_numbers<[1], [0], [0], [1], [0, 0, 1, 1], [], []>} : vector<8x4xf32>, vector<4x128xf32>, vector<8x128xf32> -> vector<8x128xf32>
    %38 = vector.broadcast %18 : vector<1x128xf32> to vector<8x128xf32>
    %39 = arith.addf %37, %38 : vector<8x128xf32>
    %cst_28 = arith.constant dense<0.000000e+00> : vector<8x128xf32>
    %40 = tpu.matmul %15, %16, %cst_28 {dimension_numbers = #tpu.dot_dimension_numbers<[1], [0], [0], [1], [0, 0, 1, 1], [], []>} : vector<8x4xf32>, vector<4x128xf32>, vector<8x128xf32> -> vector<8x128xf32>
    %41 = vector.broadcast %18 : vector<1x128xf32> to vector<8x128xf32>
    %42 = arith.addf %40, %41 : vector<8x128xf32>
    %cst_29 = arith.constant 0.000000e+00 : f32
    %43 = vector.broadcast %cst_29 : f32 to vector<8x32xf32>
    %cst_30 = arith.constant 0.000000e+00 : f32
    %44 = vector.broadcast %cst_30 : f32 to vector<8x32xf32>
    %cst_31 = arith.constant dense<0.000000e+00> : vector<8x128xf32>
    %45 = tpu.matmul %43, %17, %cst_31 {dimension_numbers = #tpu.dot_dimension_numbers<[1], [0], [0], [1], [0, 0, 1, 1], [], []>} : vector<8x32xf32>, vector<32x128xf32>, vector<8x128xf32> -> vector<8x128xf32>
    %46 = arith.addf %21, %45 : vector<8x128xf32>
    %47 = arith.negf %46 : vector<8x128xf32>
    %48 = math.exp %47 : vector<8x128xf32>
    %cst_32 = arith.constant 1.000000e+00 : f32
    %49 = vector.broadcast %cst_32 : f32 to vector<8x128xf32>
    %50 = arith.addf %49, %48 : vector<8x128xf32>
    %51 = arith.divf %49, %50 : vector<8x128xf32>
    %52 = math.tanh %46 : vector<8x128xf32>
    %53 = vector.extract_strided_slice %51 {offsets = [0, 0], sizes = [8, 32], strides = [1, 1]} : vector<8x128xf32> to vector<8x32xf32>
    %54 = vector.extract_strided_slice %51 {offsets = [0, 32], sizes = [8, 32], strides = [1, 1]} : vector<8x128xf32> to vector<8x32xf32>
    %55 = vector.extract_strided_slice %52 {offsets = [0, 64], sizes = [8, 32], strides = [1, 1]} : vector<8x128xf32> to vector<8x32xf32>
    %56 = vector.extract_strided_slice %51 {offsets = [0, 96], sizes = [8, 32], strides = [1, 1]} : vector<8x128xf32> to vector<8x32xf32>
    %57 = arith.mulf %54, %44 : vector<8x32xf32>
    %58 = arith.mulf %53, %55 : vector<8x32xf32>
    %59 = arith.addf %57, %58 : vector<8x32xf32>
    %60 = math.tanh %59 : vector<8x32xf32>
    %61 = arith.mulf %56, %60 : vector<8x32xf32>
    %cst_33 = arith.constant dense<0.000000e+00> : vector<8x128xf32>
    %62 = tpu.matmul %61, %17, %cst_33 {dimension_numbers = #tpu.dot_dimension_numbers<[1], [0], [0], [1], [0, 0, 1, 1], [], []>} : vector<8x32xf32>, vector<32x128xf32>, vector<8x128xf32> -> vector<8x128xf32>
    %63 = arith.addf %24, %62 : vector<8x128xf32>
    %64 = arith.negf %63 : vector<8x128xf32>
    %65 = math.exp %64 : vector<8x128xf32>
    %cst_34 = arith.constant 1.000000e+00 : f32
    %66 = vector.broadcast %cst_34 : f32 to vector<8x128xf32>
    %67 = arith.addf %66, %65 : vector<8x128xf32>
    %68 = arith.divf %66, %67 : vector<8x128xf32>
    %69 = math.tanh %63 : vector<8x128xf32>
    %70 = vector.extract_strided_slice %68 {offsets = [0, 0], sizes = [8, 32], strides = [1, 1]} : vector<8x128xf32> to vector<8x32xf32>
    %71 = vector.extract_strided_slice %68 {offsets = [0, 32], sizes = [8, 32], strides = [1, 1]} : vector<8x128xf32> to vector<8x32xf32>
    %72 = vector.extract_strided_slice %69 {offsets = [0, 64], sizes = [8, 32], strides = [1, 1]} : vector<8x128xf32> to vector<8x32xf32>
    %73 = vector.extract_strided_slice %68 {offsets = [0, 96], sizes = [8, 32], strides = [1, 1]} : vector<8x128xf32> to vector<8x32xf32>
    %74 = arith.mulf %71, %59 : vector<8x32xf32>
    %75 = arith.mulf %70, %72 : vector<8x32xf32>
    %76 = arith.addf %74, %75 : vector<8x32xf32>
    %77 = math.tanh %76 : vector<8x32xf32>
    %78 = arith.mulf %73, %77 : vector<8x32xf32>
    %cst_35 = arith.constant dense<0.000000e+00> : vector<8x128xf32>
    %79 = tpu.matmul %78, %17, %cst_35 {dimension_numbers = #tpu.dot_dimension_numbers<[1], [0], [0], [1], [0, 0, 1, 1], [], []>} : vector<8x32xf32>, vector<32x128xf32>, vector<8x128xf32> -> vector<8x128xf32>
    %80 = arith.addf %27, %79 : vector<8x128xf32>
    %81 = arith.negf %80 : vector<8x128xf32>
    %82 = math.exp %81 : vector<8x128xf32>
    %cst_36 = arith.constant 1.000000e+00 : f32
    %83 = vector.broadcast %cst_36 : f32 to vector<8x128xf32>
    %84 = arith.addf %83, %82 : vector<8x128xf32>
    %85 = arith.divf %83, %84 : vector<8x128xf32>
    %86 = math.tanh %80 : vector<8x128xf32>
    %87 = vector.extract_strided_slice %85 {offsets = [0, 0], sizes = [8, 32], strides = [1, 1]} : vector<8x128xf32> to vector<8x32xf32>
    %88 = vector.extract_strided_slice %85 {offsets = [0, 32], sizes = [8, 32], strides = [1, 1]} : vector<8x128xf32> to vector<8x32xf32>
    %89 = vector.extract_strided_slice %86 {offsets = [0, 64], sizes = [8, 32], strides = [1, 1]} : vector<8x128xf32> to vector<8x32xf32>
    %90 = vector.extract_strided_slice %85 {offsets = [0, 96], sizes = [8, 32], strides = [1, 1]} : vector<8x128xf32> to vector<8x32xf32>
    %91 = arith.mulf %88, %76 : vector<8x32xf32>
    %92 = arith.mulf %87, %89 : vector<8x32xf32>
    %93 = arith.addf %91, %92 : vector<8x32xf32>
    %94 = math.tanh %93 : vector<8x32xf32>
    %95 = arith.mulf %90, %94 : vector<8x32xf32>
    %cst_37 = arith.constant dense<0.000000e+00> : vector<8x128xf32>
    %96 = tpu.matmul %95, %17, %cst_37 {dimension_numbers = #tpu.dot_dimension_numbers<[1], [0], [0], [1], [0, 0, 1, 1], [], []>} : vector<8x32xf32>, vector<32x128xf32>, vector<8x128xf32> -> vector<8x128xf32>
    %97 = arith.addf %30, %96 : vector<8x128xf32>
    %98 = arith.negf %97 : vector<8x128xf32>
    %99 = math.exp %98 : vector<8x128xf32>
    %cst_38 = arith.constant 1.000000e+00 : f32
    %100 = vector.broadcast %cst_38 : f32 to vector<8x128xf32>
    %101 = arith.addf %100, %99 : vector<8x128xf32>
    %102 = arith.divf %100, %101 : vector<8x128xf32>
    %103 = math.tanh %97 : vector<8x128xf32>
    %104 = vector.extract_strided_slice %102 {offsets = [0, 0], sizes = [8, 32], strides = [1, 1]} : vector<8x128xf32> to vector<8x32xf32>
    %105 = vector.extract_strided_slice %102 {offsets = [0, 32], sizes = [8, 32], strides = [1, 1]} : vector<8x128xf32> to vector<8x32xf32>
    %106 = vector.extract_strided_slice %103 {offsets = [0, 64], sizes = [8, 32], strides = [1, 1]} : vector<8x128xf32> to vector<8x32xf32>
    %107 = vector.extract_strided_slice %102 {offsets = [0, 96], sizes = [8, 32], strides = [1, 1]} : vector<8x128xf32> to vector<8x32xf32>
    %108 = arith.mulf %105, %93 : vector<8x32xf32>
    %109 = arith.mulf %104, %106 : vector<8x32xf32>
    %110 = arith.addf %108, %109 : vector<8x32xf32>
    %111 = math.tanh %110 : vector<8x32xf32>
    %112 = arith.mulf %107, %111 : vector<8x32xf32>
    %cst_39 = arith.constant dense<0.000000e+00> : vector<8x128xf32>
    %113 = tpu.matmul %112, %17, %cst_39 {dimension_numbers = #tpu.dot_dimension_numbers<[1], [0], [0], [1], [0, 0, 1, 1], [], []>} : vector<8x32xf32>, vector<32x128xf32>, vector<8x128xf32> -> vector<8x128xf32>
    %114 = arith.addf %33, %113 : vector<8x128xf32>
    %115 = arith.negf %114 : vector<8x128xf32>
    %116 = math.exp %115 : vector<8x128xf32>
    %cst_40 = arith.constant 1.000000e+00 : f32
    %117 = vector.broadcast %cst_40 : f32 to vector<8x128xf32>
    %118 = arith.addf %117, %116 : vector<8x128xf32>
    %119 = arith.divf %117, %118 : vector<8x128xf32>
    %120 = math.tanh %114 : vector<8x128xf32>
    %121 = vector.extract_strided_slice %119 {offsets = [0, 0], sizes = [8, 32], strides = [1, 1]} : vector<8x128xf32> to vector<8x32xf32>
    %122 = vector.extract_strided_slice %119 {offsets = [0, 32], sizes = [8, 32], strides = [1, 1]} : vector<8x128xf32> to vector<8x32xf32>
    %123 = vector.extract_strided_slice %120 {offsets = [0, 64], sizes = [8, 32], strides = [1, 1]} : vector<8x128xf32> to vector<8x32xf32>
    %124 = vector.extract_strided_slice %119 {offsets = [0, 96], sizes = [8, 32], strides = [1, 1]} : vector<8x128xf32> to vector<8x32xf32>
    %125 = arith.mulf %122, %110 : vector<8x32xf32>
    %126 = arith.mulf %121, %123 : vector<8x32xf32>
    %127 = arith.addf %125, %126 : vector<8x32xf32>
    %128 = math.tanh %127 : vector<8x32xf32>
    %129 = arith.mulf %124, %128 : vector<8x32xf32>
    %cst_41 = arith.constant dense<0.000000e+00> : vector<8x128xf32>
    %130 = tpu.matmul %129, %17, %cst_41 {dimension_numbers = #tpu.dot_dimension_numbers<[1], [0], [0], [1], [0, 0, 1, 1], [], []>} : vector<8x32xf32>, vector<32x128xf32>, vector<8x128xf32> -> vector<8x128xf32>
    %131 = arith.addf %36, %130 : vector<8x128xf32>
    %132 = arith.negf %131 : vector<8x128xf32>
    %133 = math.exp %132 : vector<8x128xf32>
    %cst_42 = arith.constant 1.000000e+00 : f32
    %134 = vector.broadcast %cst_42 : f32 to vector<8x128xf32>
    %135 = arith.addf %134, %133 : vector<8x128xf32>
    %136 = arith.divf %134, %135 : vector<8x128xf32>
    %137 = math.tanh %131 : vector<8x128xf32>
    %138 = vector.extract_strided_slice %136 {offsets = [0, 0], sizes = [8, 32], strides = [1, 1]} : vector<8x128xf32> to vector<8x32xf32>
    %139 = vector.extract_strided_slice %136 {offsets = [0, 32], sizes = [8, 32], strides = [1, 1]} : vector<8x128xf32> to vector<8x32xf32>
    %140 = vector.extract_strided_slice %137 {offsets = [0, 64], sizes = [8, 32], strides = [1, 1]} : vector<8x128xf32> to vector<8x32xf32>
    %141 = vector.extract_strided_slice %136 {offsets = [0, 96], sizes = [8, 32], strides = [1, 1]} : vector<8x128xf32> to vector<8x32xf32>
    %142 = arith.mulf %139, %127 : vector<8x32xf32>
    %143 = arith.mulf %138, %140 : vector<8x32xf32>
    %144 = arith.addf %142, %143 : vector<8x32xf32>
    %145 = math.tanh %144 : vector<8x32xf32>
    %146 = arith.mulf %141, %145 : vector<8x32xf32>
    %cst_43 = arith.constant dense<0.000000e+00> : vector<8x128xf32>
    %147 = tpu.matmul %146, %17, %cst_43 {dimension_numbers = #tpu.dot_dimension_numbers<[1], [0], [0], [1], [0, 0, 1, 1], [], []>} : vector<8x32xf32>, vector<32x128xf32>, vector<8x128xf32> -> vector<8x128xf32>
    %148 = arith.addf %39, %147 : vector<8x128xf32>
    %149 = arith.negf %148 : vector<8x128xf32>
    %150 = math.exp %149 : vector<8x128xf32>
    %cst_44 = arith.constant 1.000000e+00 : f32
    %151 = vector.broadcast %cst_44 : f32 to vector<8x128xf32>
    %152 = arith.addf %151, %150 : vector<8x128xf32>
    %153 = arith.divf %151, %152 : vector<8x128xf32>
    %154 = math.tanh %148 : vector<8x128xf32>
    %155 = vector.extract_strided_slice %153 {offsets = [0, 0], sizes = [8, 32], strides = [1, 1]} : vector<8x128xf32> to vector<8x32xf32>
    %156 = vector.extract_strided_slice %153 {offsets = [0, 32], sizes = [8, 32], strides = [1, 1]} : vector<8x128xf32> to vector<8x32xf32>
    %157 = vector.extract_strided_slice %154 {offsets = [0, 64], sizes = [8, 32], strides = [1, 1]} : vector<8x128xf32> to vector<8x32xf32>
    %158 = vector.extract_strided_slice %153 {offsets = [0, 96], sizes = [8, 32], strides = [1, 1]} : vector<8x128xf32> to vector<8x32xf32>
    %159 = arith.mulf %156, %144 : vector<8x32xf32>
    %160 = arith.mulf %155, %157 : vector<8x32xf32>
    %161 = arith.addf %159, %160 : vector<8x32xf32>
    %162 = math.tanh %161 : vector<8x32xf32>
    %163 = arith.mulf %158, %162 : vector<8x32xf32>
    %cst_45 = arith.constant dense<0.000000e+00> : vector<8x128xf32>
    %164 = tpu.matmul %163, %17, %cst_45 {dimension_numbers = #tpu.dot_dimension_numbers<[1], [0], [0], [1], [0, 0, 1, 1], [], []>} : vector<8x32xf32>, vector<32x128xf32>, vector<8x128xf32> -> vector<8x128xf32>
    %165 = arith.addf %42, %164 : vector<8x128xf32>
    %166 = arith.negf %165 : vector<8x128xf32>
    %167 = math.exp %166 : vector<8x128xf32>
    %cst_46 = arith.constant 1.000000e+00 : f32
    %168 = vector.broadcast %cst_46 : f32 to vector<8x128xf32>
    %169 = arith.addf %168, %167 : vector<8x128xf32>
    %170 = arith.divf %168, %169 : vector<8x128xf32>
    %171 = math.tanh %165 : vector<8x128xf32>
    %172 = vector.extract_strided_slice %170 {offsets = [0, 0], sizes = [8, 32], strides = [1, 1]} : vector<8x128xf32> to vector<8x32xf32>
    %173 = vector.extract_strided_slice %170 {offsets = [0, 32], sizes = [8, 32], strides = [1, 1]} : vector<8x128xf32> to vector<8x32xf32>
    %174 = vector.extract_strided_slice %171 {offsets = [0, 64], sizes = [8, 32], strides = [1, 1]} : vector<8x128xf32> to vector<8x32xf32>
    %175 = vector.extract_strided_slice %170 {offsets = [0, 96], sizes = [8, 32], strides = [1, 1]} : vector<8x128xf32> to vector<8x32xf32>
    %176 = arith.mulf %173, %161 : vector<8x32xf32>
    %177 = arith.mulf %172, %174 : vector<8x32xf32>
    %178 = arith.addf %176, %177 : vector<8x32xf32>
    %179 = math.tanh %178 : vector<8x32xf32>
    %180 = arith.mulf %175, %179 : vector<8x32xf32>
    %c0_47 = arith.constant 0 : index
    %c0_48 = arith.constant 0 : index
    %181 = vector.load %arg5[%c0_47, %c0_48] : memref<32x128xf32, #tpu.memory_space<vmem>>, vector<32x128xf32>
    %c0_49 = arith.constant 0 : index
    %c0_50 = arith.constant 0 : index
    %182 = vector.load %arg6[%c0_49, %c0_50] : memref<32x128xf32, #tpu.memory_space<vmem>>, vector<32x128xf32>
    %c0_51 = arith.constant 0 : index
    %c0_52 = arith.constant 0 : index
    %183 = vector.load %arg7[%c0_51, %c0_52] : memref<1x128xf32, #tpu.memory_space<vmem>>, vector<1x128xf32>
    %cst_53 = arith.constant dense<0.000000e+00> : vector<8x128xf32>
    %184 = tpu.matmul %61, %181, %cst_53 {dimension_numbers = #tpu.dot_dimension_numbers<[1], [0], [0], [1], [0, 0, 1, 1], [], []>} : vector<8x32xf32>, vector<32x128xf32>, vector<8x128xf32> -> vector<8x128xf32>
    %185 = vector.broadcast %183 : vector<1x128xf32> to vector<8x128xf32>
    %186 = arith.addf %184, %185 : vector<8x128xf32>
    %cst_54 = arith.constant dense<0.000000e+00> : vector<8x128xf32>
    %187 = tpu.matmul %78, %181, %cst_54 {dimension_numbers = #tpu.dot_dimension_numbers<[1], [0], [0], [1], [0, 0, 1, 1], [], []>} : vector<8x32xf32>, vector<32x128xf32>, vector<8x128xf32> -> vector<8x128xf32>
    %188 = vector.broadcast %183 : vector<1x128xf32> to vector<8x128xf32>
    %189 = arith.addf %187, %188 : vector<8x128xf32>
    %cst_55 = arith.constant dense<0.000000e+00> : vector<8x128xf32>
    %190 = tpu.matmul %95, %181, %cst_55 {dimension_numbers = #tpu.dot_dimension_numbers<[1], [0], [0], [1], [0, 0, 1, 1], [], []>} : vector<8x32xf32>, vector<32x128xf32>, vector<8x128xf32> -> vector<8x128xf32>
    %191 = vector.broadcast %183 : vector<1x128xf32> to vector<8x128xf32>
    %192 = arith.addf %190, %191 : vector<8x128xf32>
    %cst_56 = arith.constant dense<0.000000e+00> : vector<8x128xf32>
    %193 = tpu.matmul %112, %181, %cst_56 {dimension_numbers = #tpu.dot_dimension_numbers<[1], [0], [0], [1], [0, 0, 1, 1], [], []>} : vector<8x32xf32>, vector<32x128xf32>, vector<8x128xf32> -> vector<8x128xf32>
    %194 = vector.broadcast %183 : vector<1x128xf32> to vector<8x128xf32>
    %195 = arith.addf %193, %194 : vector<8x128xf32>
    %cst_57 = arith.constant dense<0.000000e+00> : vector<8x128xf32>
    %196 = tpu.matmul %129, %181, %cst_57 {dimension_numbers = #tpu.dot_dimension_numbers<[1], [0], [0], [1], [0, 0, 1, 1], [], []>} : vector<8x32xf32>, vector<32x128xf32>, vector<8x128xf32> -> vector<8x128xf32>
    %197 = vector.broadcast %183 : vector<1x128xf32> to vector<8x128xf32>
    %198 = arith.addf %196, %197 : vector<8x128xf32>
    %cst_58 = arith.constant dense<0.000000e+00> : vector<8x128xf32>
    %199 = tpu.matmul %146, %181, %cst_58 {dimension_numbers = #tpu.dot_dimension_numbers<[1], [0], [0], [1], [0, 0, 1, 1], [], []>} : vector<8x32xf32>, vector<32x128xf32>, vector<8x128xf32> -> vector<8x128xf32>
    %200 = vector.broadcast %183 : vector<1x128xf32> to vector<8x128xf32>
    %201 = arith.addf %199, %200 : vector<8x128xf32>
    %cst_59 = arith.constant dense<0.000000e+00> : vector<8x128xf32>
    %202 = tpu.matmul %163, %181, %cst_59 {dimension_numbers = #tpu.dot_dimension_numbers<[1], [0], [0], [1], [0, 0, 1, 1], [], []>} : vector<8x32xf32>, vector<32x128xf32>, vector<8x128xf32> -> vector<8x128xf32>
    %203 = vector.broadcast %183 : vector<1x128xf32> to vector<8x128xf32>
    %204 = arith.addf %202, %203 : vector<8x128xf32>
    %cst_60 = arith.constant dense<0.000000e+00> : vector<8x128xf32>
    %205 = tpu.matmul %180, %181, %cst_60 {dimension_numbers = #tpu.dot_dimension_numbers<[1], [0], [0], [1], [0, 0, 1, 1], [], []>} : vector<8x32xf32>, vector<32x128xf32>, vector<8x128xf32> -> vector<8x128xf32>
    %206 = vector.broadcast %183 : vector<1x128xf32> to vector<8x128xf32>
    %207 = arith.addf %205, %206 : vector<8x128xf32>
    %cst_61 = arith.constant 0.000000e+00 : f32
    %208 = vector.broadcast %cst_61 : f32 to vector<8x32xf32>
    %cst_62 = arith.constant 0.000000e+00 : f32
    %209 = vector.broadcast %cst_62 : f32 to vector<8x32xf32>
    %cst_63 = arith.constant dense<0.000000e+00> : vector<8x128xf32>
    %210 = tpu.matmul %208, %182, %cst_63 {dimension_numbers = #tpu.dot_dimension_numbers<[1], [0], [0], [1], [0, 0, 1, 1], [], []>} : vector<8x32xf32>, vector<32x128xf32>, vector<8x128xf32> -> vector<8x128xf32>
    %211 = arith.addf %186, %210 : vector<8x128xf32>
    %212 = arith.negf %211 : vector<8x128xf32>
    %213 = math.exp %212 : vector<8x128xf32>
    %cst_64 = arith.constant 1.000000e+00 : f32
    %214 = vector.broadcast %cst_64 : f32 to vector<8x128xf32>
    %215 = arith.addf %214, %213 : vector<8x128xf32>
    %216 = arith.divf %214, %215 : vector<8x128xf32>
    %217 = math.tanh %211 : vector<8x128xf32>
    %218 = vector.extract_strided_slice %216 {offsets = [0, 0], sizes = [8, 32], strides = [1, 1]} : vector<8x128xf32> to vector<8x32xf32>
    %219 = vector.extract_strided_slice %216 {offsets = [0, 32], sizes = [8, 32], strides = [1, 1]} : vector<8x128xf32> to vector<8x32xf32>
    %220 = vector.extract_strided_slice %217 {offsets = [0, 64], sizes = [8, 32], strides = [1, 1]} : vector<8x128xf32> to vector<8x32xf32>
    %221 = vector.extract_strided_slice %216 {offsets = [0, 96], sizes = [8, 32], strides = [1, 1]} : vector<8x128xf32> to vector<8x32xf32>
    %222 = arith.mulf %219, %209 : vector<8x32xf32>
    %223 = arith.mulf %218, %220 : vector<8x32xf32>
    %224 = arith.addf %222, %223 : vector<8x32xf32>
    %225 = math.tanh %224 : vector<8x32xf32>
    %226 = arith.mulf %221, %225 : vector<8x32xf32>
    %cst_65 = arith.constant dense<0.000000e+00> : vector<8x128xf32>
    %227 = tpu.matmul %226, %182, %cst_65 {dimension_numbers = #tpu.dot_dimension_numbers<[1], [0], [0], [1], [0, 0, 1, 1], [], []>} : vector<8x32xf32>, vector<32x128xf32>, vector<8x128xf32> -> vector<8x128xf32>
    %228 = arith.addf %189, %227 : vector<8x128xf32>
    %229 = arith.negf %228 : vector<8x128xf32>
    %230 = math.exp %229 : vector<8x128xf32>
    %cst_66 = arith.constant 1.000000e+00 : f32
    %231 = vector.broadcast %cst_66 : f32 to vector<8x128xf32>
    %232 = arith.addf %231, %230 : vector<8x128xf32>
    %233 = arith.divf %231, %232 : vector<8x128xf32>
    %234 = math.tanh %228 : vector<8x128xf32>
    %235 = vector.extract_strided_slice %233 {offsets = [0, 0], sizes = [8, 32], strides = [1, 1]} : vector<8x128xf32> to vector<8x32xf32>
    %236 = vector.extract_strided_slice %233 {offsets = [0, 32], sizes = [8, 32], strides = [1, 1]} : vector<8x128xf32> to vector<8x32xf32>
    %237 = vector.extract_strided_slice %234 {offsets = [0, 64], sizes = [8, 32], strides = [1, 1]} : vector<8x128xf32> to vector<8x32xf32>
    %238 = vector.extract_strided_slice %233 {offsets = [0, 96], sizes = [8, 32], strides = [1, 1]} : vector<8x128xf32> to vector<8x32xf32>
    %239 = arith.mulf %236, %224 : vector<8x32xf32>
    %240 = arith.mulf %235, %237 : vector<8x32xf32>
    %241 = arith.addf %239, %240 : vector<8x32xf32>
    %242 = math.tanh %241 : vector<8x32xf32>
    %243 = arith.mulf %238, %242 : vector<8x32xf32>
    %cst_67 = arith.constant dense<0.000000e+00> : vector<8x128xf32>
    %244 = tpu.matmul %243, %182, %cst_67 {dimension_numbers = #tpu.dot_dimension_numbers<[1], [0], [0], [1], [0, 0, 1, 1], [], []>} : vector<8x32xf32>, vector<32x128xf32>, vector<8x128xf32> -> vector<8x128xf32>
    %245 = arith.addf %192, %244 : vector<8x128xf32>
    %246 = arith.negf %245 : vector<8x128xf32>
    %247 = math.exp %246 : vector<8x128xf32>
    %cst_68 = arith.constant 1.000000e+00 : f32
    %248 = vector.broadcast %cst_68 : f32 to vector<8x128xf32>
    %249 = arith.addf %248, %247 : vector<8x128xf32>
    %250 = arith.divf %248, %249 : vector<8x128xf32>
    %251 = math.tanh %245 : vector<8x128xf32>
    %252 = vector.extract_strided_slice %250 {offsets = [0, 0], sizes = [8, 32], strides = [1, 1]} : vector<8x128xf32> to vector<8x32xf32>
    %253 = vector.extract_strided_slice %250 {offsets = [0, 32], sizes = [8, 32], strides = [1, 1]} : vector<8x128xf32> to vector<8x32xf32>
    %254 = vector.extract_strided_slice %251 {offsets = [0, 64], sizes = [8, 32], strides = [1, 1]} : vector<8x128xf32> to vector<8x32xf32>
    %255 = vector.extract_strided_slice %250 {offsets = [0, 96], sizes = [8, 32], strides = [1, 1]} : vector<8x128xf32> to vector<8x32xf32>
    %256 = arith.mulf %253, %241 : vector<8x32xf32>
    %257 = arith.mulf %252, %254 : vector<8x32xf32>
    %258 = arith.addf %256, %257 : vector<8x32xf32>
    %259 = math.tanh %258 : vector<8x32xf32>
    %260 = arith.mulf %255, %259 : vector<8x32xf32>
    %cst_69 = arith.constant dense<0.000000e+00> : vector<8x128xf32>
    %261 = tpu.matmul %260, %182, %cst_69 {dimension_numbers = #tpu.dot_dimension_numbers<[1], [0], [0], [1], [0, 0, 1, 1], [], []>} : vector<8x32xf32>, vector<32x128xf32>, vector<8x128xf32> -> vector<8x128xf32>
    %262 = arith.addf %195, %261 : vector<8x128xf32>
    %263 = arith.negf %262 : vector<8x128xf32>
    %264 = math.exp %263 : vector<8x128xf32>
    %cst_70 = arith.constant 1.000000e+00 : f32
    %265 = vector.broadcast %cst_70 : f32 to vector<8x128xf32>
    %266 = arith.addf %265, %264 : vector<8x128xf32>
    %267 = arith.divf %265, %266 : vector<8x128xf32>
    %268 = math.tanh %262 : vector<8x128xf32>
    %269 = vector.extract_strided_slice %267 {offsets = [0, 0], sizes = [8, 32], strides = [1, 1]} : vector<8x128xf32> to vector<8x32xf32>
    %270 = vector.extract_strided_slice %267 {offsets = [0, 32], sizes = [8, 32], strides = [1, 1]} : vector<8x128xf32> to vector<8x32xf32>
    %271 = vector.extract_strided_slice %268 {offsets = [0, 64], sizes = [8, 32], strides = [1, 1]} : vector<8x128xf32> to vector<8x32xf32>
    %272 = vector.extract_strided_slice %267 {offsets = [0, 96], sizes = [8, 32], strides = [1, 1]} : vector<8x128xf32> to vector<8x32xf32>
    %273 = arith.mulf %270, %258 : vector<8x32xf32>
    %274 = arith.mulf %269, %271 : vector<8x32xf32>
    %275 = arith.addf %273, %274 : vector<8x32xf32>
    %276 = math.tanh %275 : vector<8x32xf32>
    %277 = arith.mulf %272, %276 : vector<8x32xf32>
    %cst_71 = arith.constant dense<0.000000e+00> : vector<8x128xf32>
    %278 = tpu.matmul %277, %182, %cst_71 {dimension_numbers = #tpu.dot_dimension_numbers<[1], [0], [0], [1], [0, 0, 1, 1], [], []>} : vector<8x32xf32>, vector<32x128xf32>, vector<8x128xf32> -> vector<8x128xf32>
    %279 = arith.addf %198, %278 : vector<8x128xf32>
    %280 = arith.negf %279 : vector<8x128xf32>
    %281 = math.exp %280 : vector<8x128xf32>
    %cst_72 = arith.constant 1.000000e+00 : f32
    %282 = vector.broadcast %cst_72 : f32 to vector<8x128xf32>
    %283 = arith.addf %282, %281 : vector<8x128xf32>
    %284 = arith.divf %282, %283 : vector<8x128xf32>
    %285 = math.tanh %279 : vector<8x128xf32>
    %286 = vector.extract_strided_slice %284 {offsets = [0, 0], sizes = [8, 32], strides = [1, 1]} : vector<8x128xf32> to vector<8x32xf32>
    %287 = vector.extract_strided_slice %284 {offsets = [0, 32], sizes = [8, 32], strides = [1, 1]} : vector<8x128xf32> to vector<8x32xf32>
    %288 = vector.extract_strided_slice %285 {offsets = [0, 64], sizes = [8, 32], strides = [1, 1]} : vector<8x128xf32> to vector<8x32xf32>
    %289 = vector.extract_strided_slice %284 {offsets = [0, 96], sizes = [8, 32], strides = [1, 1]} : vector<8x128xf32> to vector<8x32xf32>
    %290 = arith.mulf %287, %275 : vector<8x32xf32>
    %291 = arith.mulf %286, %288 : vector<8x32xf32>
    %292 = arith.addf %290, %291 : vector<8x32xf32>
    %293 = math.tanh %292 : vector<8x32xf32>
    %294 = arith.mulf %289, %293 : vector<8x32xf32>
    %cst_73 = arith.constant dense<0.000000e+00> : vector<8x128xf32>
    %295 = tpu.matmul %294, %182, %cst_73 {dimension_numbers = #tpu.dot_dimension_numbers<[1], [0], [0], [1], [0, 0, 1, 1], [], []>} : vector<8x32xf32>, vector<32x128xf32>, vector<8x128xf32> -> vector<8x128xf32>
    %296 = arith.addf %201, %295 : vector<8x128xf32>
    %297 = arith.negf %296 : vector<8x128xf32>
    %298 = math.exp %297 : vector<8x128xf32>
    %cst_74 = arith.constant 1.000000e+00 : f32
    %299 = vector.broadcast %cst_74 : f32 to vector<8x128xf32>
    %300 = arith.addf %299, %298 : vector<8x128xf32>
    %301 = arith.divf %299, %300 : vector<8x128xf32>
    %302 = math.tanh %296 : vector<8x128xf32>
    %303 = vector.extract_strided_slice %301 {offsets = [0, 0], sizes = [8, 32], strides = [1, 1]} : vector<8x128xf32> to vector<8x32xf32>
    %304 = vector.extract_strided_slice %301 {offsets = [0, 32], sizes = [8, 32], strides = [1, 1]} : vector<8x128xf32> to vector<8x32xf32>
    %305 = vector.extract_strided_slice %302 {offsets = [0, 64], sizes = [8, 32], strides = [1, 1]} : vector<8x128xf32> to vector<8x32xf32>
    %306 = vector.extract_strided_slice %301 {offsets = [0, 96], sizes = [8, 32], strides = [1, 1]} : vector<8x128xf32> to vector<8x32xf32>
    %307 = arith.mulf %304, %292 : vector<8x32xf32>
    %308 = arith.mulf %303, %305 : vector<8x32xf32>
    %309 = arith.addf %307, %308 : vector<8x32xf32>
    %310 = math.tanh %309 : vector<8x32xf32>
    %311 = arith.mulf %306, %310 : vector<8x32xf32>
    %cst_75 = arith.constant dense<0.000000e+00> : vector<8x128xf32>
    %312 = tpu.matmul %311, %182, %cst_75 {dimension_numbers = #tpu.dot_dimension_numbers<[1], [0], [0], [1], [0, 0, 1, 1], [], []>} : vector<8x32xf32>, vector<32x128xf32>, vector<8x128xf32> -> vector<8x128xf32>
    %313 = arith.addf %204, %312 : vector<8x128xf32>
    %314 = arith.negf %313 : vector<8x128xf32>
    %315 = math.exp %314 : vector<8x128xf32>
    %cst_76 = arith.constant 1.000000e+00 : f32
    %316 = vector.broadcast %cst_76 : f32 to vector<8x128xf32>
    %317 = arith.addf %316, %315 : vector<8x128xf32>
    %318 = arith.divf %316, %317 : vector<8x128xf32>
    %319 = math.tanh %313 : vector<8x128xf32>
    %320 = vector.extract_strided_slice %318 {offsets = [0, 0], sizes = [8, 32], strides = [1, 1]} : vector<8x128xf32> to vector<8x32xf32>
    %321 = vector.extract_strided_slice %318 {offsets = [0, 32], sizes = [8, 32], strides = [1, 1]} : vector<8x128xf32> to vector<8x32xf32>
    %322 = vector.extract_strided_slice %319 {offsets = [0, 64], sizes = [8, 32], strides = [1, 1]} : vector<8x128xf32> to vector<8x32xf32>
    %323 = vector.extract_strided_slice %318 {offsets = [0, 96], sizes = [8, 32], strides = [1, 1]} : vector<8x128xf32> to vector<8x32xf32>
    %324 = arith.mulf %321, %309 : vector<8x32xf32>
    %325 = arith.mulf %320, %322 : vector<8x32xf32>
    %326 = arith.addf %324, %325 : vector<8x32xf32>
    %327 = math.tanh %326 : vector<8x32xf32>
    %328 = arith.mulf %323, %327 : vector<8x32xf32>
    %cst_77 = arith.constant dense<0.000000e+00> : vector<8x128xf32>
    %329 = tpu.matmul %328, %182, %cst_77 {dimension_numbers = #tpu.dot_dimension_numbers<[1], [0], [0], [1], [0, 0, 1, 1], [], []>} : vector<8x32xf32>, vector<32x128xf32>, vector<8x128xf32> -> vector<8x128xf32>
    %330 = arith.addf %207, %329 : vector<8x128xf32>
    %331 = arith.negf %330 : vector<8x128xf32>
    %332 = math.exp %331 : vector<8x128xf32>
    %cst_78 = arith.constant 1.000000e+00 : f32
    %333 = vector.broadcast %cst_78 : f32 to vector<8x128xf32>
    %334 = arith.addf %333, %332 : vector<8x128xf32>
    %335 = arith.divf %333, %334 : vector<8x128xf32>
    %336 = math.tanh %330 : vector<8x128xf32>
    %337 = vector.extract_strided_slice %335 {offsets = [0, 0], sizes = [8, 32], strides = [1, 1]} : vector<8x128xf32> to vector<8x32xf32>
    %338 = vector.extract_strided_slice %335 {offsets = [0, 32], sizes = [8, 32], strides = [1, 1]} : vector<8x128xf32> to vector<8x32xf32>
    %339 = vector.extract_strided_slice %336 {offsets = [0, 64], sizes = [8, 32], strides = [1, 1]} : vector<8x128xf32> to vector<8x32xf32>
    %340 = vector.extract_strided_slice %335 {offsets = [0, 96], sizes = [8, 32], strides = [1, 1]} : vector<8x128xf32> to vector<8x32xf32>
    %341 = arith.mulf %338, %326 : vector<8x32xf32>
    %342 = arith.mulf %337, %339 : vector<8x32xf32>
    %343 = arith.addf %341, %342 : vector<8x32xf32>
    %344 = math.tanh %343 : vector<8x32xf32>
    %345 = arith.mulf %340, %344 : vector<8x32xf32>
    %cst_79 = arith.constant 0.000000e+00 : f32
    %346 = vector.broadcast %cst_79 : f32 to vector<8x32xf32>
    %c0_80 = arith.constant 0 : index
    %c0_81 = arith.constant 0 : index
    %c0_82 = arith.constant 0 : index
    %347 = vector.load %arg8[%c0_80, %c0_81, %c0_82] : memref<8x32x32xf32, #tpu.memory_space<vmem>>, vector<1x32x32xf32>
    %348 = vector.shape_cast %347 : vector<1x32x32xf32> to vector<32x32xf32>
    %cst_83 = arith.constant dense<0.000000e+00> : vector<8x32xf32>
    %349 = tpu.matmul %226, %348, %cst_83 {dimension_numbers = #tpu.dot_dimension_numbers<[1], [0], [0], [1], [0, 0, 1, 1], [], []>} : vector<8x32xf32>, vector<32x32xf32>, vector<8x32xf32> -> vector<8x32xf32>
    %350 = arith.addf %346, %349 : vector<8x32xf32>
    %c1_84 = arith.constant 1 : index
    %c0_85 = arith.constant 0 : index
    %c0_86 = arith.constant 0 : index
    %351 = vector.load %arg8[%c1_84, %c0_85, %c0_86] : memref<8x32x32xf32, #tpu.memory_space<vmem>>, vector<1x32x32xf32>
    %352 = vector.shape_cast %351 : vector<1x32x32xf32> to vector<32x32xf32>
    %cst_87 = arith.constant dense<0.000000e+00> : vector<8x32xf32>
    %353 = tpu.matmul %243, %352, %cst_87 {dimension_numbers = #tpu.dot_dimension_numbers<[1], [0], [0], [1], [0, 0, 1, 1], [], []>} : vector<8x32xf32>, vector<32x32xf32>, vector<8x32xf32> -> vector<8x32xf32>
    %354 = arith.addf %350, %353 : vector<8x32xf32>
    %c2_88 = arith.constant 2 : index
    %c0_89 = arith.constant 0 : index
    %c0_90 = arith.constant 0 : index
    %355 = vector.load %arg8[%c2_88, %c0_89, %c0_90] : memref<8x32x32xf32, #tpu.memory_space<vmem>>, vector<1x32x32xf32>
    %356 = vector.shape_cast %355 : vector<1x32x32xf32> to vector<32x32xf32>
    %cst_91 = arith.constant dense<0.000000e+00> : vector<8x32xf32>
    %357 = tpu.matmul %260, %356, %cst_91 {dimension_numbers = #tpu.dot_dimension_numbers<[1], [0], [0], [1], [0, 0, 1, 1], [], []>} : vector<8x32xf32>, vector<32x32xf32>, vector<8x32xf32> -> vector<8x32xf32>
    %358 = arith.addf %354, %357 : vector<8x32xf32>
    %c3_92 = arith.constant 3 : index
    %c0_93 = arith.constant 0 : index
    %c0_94 = arith.constant 0 : index
    %359 = vector.load %arg8[%c3_92, %c0_93, %c0_94] : memref<8x32x32xf32, #tpu.memory_space<vmem>>, vector<1x32x32xf32>
    %360 = vector.shape_cast %359 : vector<1x32x32xf32> to vector<32x32xf32>
    %cst_95 = arith.constant dense<0.000000e+00> : vector<8x32xf32>
    %361 = tpu.matmul %277, %360, %cst_95 {dimension_numbers = #tpu.dot_dimension_numbers<[1], [0], [0], [1], [0, 0, 1, 1], [], []>} : vector<8x32xf32>, vector<32x32xf32>, vector<8x32xf32> -> vector<8x32xf32>
    %362 = arith.addf %358, %361 : vector<8x32xf32>
    %c4_96 = arith.constant 4 : index
    %c0_97 = arith.constant 0 : index
    %c0_98 = arith.constant 0 : index
    %363 = vector.load %arg8[%c4_96, %c0_97, %c0_98] : memref<8x32x32xf32, #tpu.memory_space<vmem>>, vector<1x32x32xf32>
    %364 = vector.shape_cast %363 : vector<1x32x32xf32> to vector<32x32xf32>
    %cst_99 = arith.constant dense<0.000000e+00> : vector<8x32xf32>
    %365 = tpu.matmul %294, %364, %cst_99 {dimension_numbers = #tpu.dot_dimension_numbers<[1], [0], [0], [1], [0, 0, 1, 1], [], []>} : vector<8x32xf32>, vector<32x32xf32>, vector<8x32xf32> -> vector<8x32xf32>
    %366 = arith.addf %362, %365 : vector<8x32xf32>
    %c5_100 = arith.constant 5 : index
    %c0_101 = arith.constant 0 : index
    %c0_102 = arith.constant 0 : index
    %367 = vector.load %arg8[%c5_100, %c0_101, %c0_102] : memref<8x32x32xf32, #tpu.memory_space<vmem>>, vector<1x32x32xf32>
    %368 = vector.shape_cast %367 : vector<1x32x32xf32> to vector<32x32xf32>
    %cst_103 = arith.constant dense<0.000000e+00> : vector<8x32xf32>
    %369 = tpu.matmul %311, %368, %cst_103 {dimension_numbers = #tpu.dot_dimension_numbers<[1], [0], [0], [1], [0, 0, 1, 1], [], []>} : vector<8x32xf32>, vector<32x32xf32>, vector<8x32xf32> -> vector<8x32xf32>
    %370 = arith.addf %366, %369 : vector<8x32xf32>
    %c6_104 = arith.constant 6 : index
    %c0_105 = arith.constant 0 : index
    %c0_106 = arith.constant 0 : index
    %371 = vector.load %arg8[%c6_104, %c0_105, %c0_106] : memref<8x32x32xf32, #tpu.memory_space<vmem>>, vector<1x32x32xf32>
    %372 = vector.shape_cast %371 : vector<1x32x32xf32> to vector<32x32xf32>
    %cst_107 = arith.constant dense<0.000000e+00> : vector<8x32xf32>
    %373 = tpu.matmul %328, %372, %cst_107 {dimension_numbers = #tpu.dot_dimension_numbers<[1], [0], [0], [1], [0, 0, 1, 1], [], []>} : vector<8x32xf32>, vector<32x32xf32>, vector<8x32xf32> -> vector<8x32xf32>
    %374 = arith.addf %370, %373 : vector<8x32xf32>
    %c7_108 = arith.constant 7 : index
    %c0_109 = arith.constant 0 : index
    %c0_110 = arith.constant 0 : index
    %375 = vector.load %arg8[%c7_108, %c0_109, %c0_110] : memref<8x32x32xf32, #tpu.memory_space<vmem>>, vector<1x32x32xf32>
    %376 = vector.shape_cast %375 : vector<1x32x32xf32> to vector<32x32xf32>
    %cst_111 = arith.constant dense<0.000000e+00> : vector<8x32xf32>
    %377 = tpu.matmul %345, %376, %cst_111 {dimension_numbers = #tpu.dot_dimension_numbers<[1], [0], [0], [1], [0, 0, 1, 1], [], []>} : vector<8x32xf32>, vector<32x32xf32>, vector<8x32xf32> -> vector<8x32xf32>
    %378 = arith.addf %374, %377 : vector<8x32xf32>
    %c0_112 = arith.constant 0 : index
    %c0_113 = arith.constant 0 : index
    %379 = vector.load %arg9[%c0_112, %c0_113] : memref<1x32xf32, #tpu.memory_space<vmem>>, vector<1x32xf32>
    %380 = vector.broadcast %379 : vector<1x32xf32> to vector<8x32xf32>
    %381 = arith.addf %378, %380 : vector<8x32xf32>
    %c0_114 = arith.constant 0 : index
    %c0_115 = arith.constant 0 : index
    %382 = vector.load %arg10[%c0_114, %c0_115] : memref<8x32xf32, #tpu.memory_space<vmem>>, vector<8x32xf32>
    tpu.vector_store %arg10[%c0_114, %c0_115], %381 {strides = array<i32>} : memref<8x32xf32, #tpu.memory_space<vmem>>, vector<8x32xf32>,
    return
  }
  func.func @transform_0(%arg0: i32) -> (i32, i32, i32) {
    %c0_i32 = arith.constant 0 : i32
    %c0_i32_0 = arith.constant 0 : i32
    %c0_i32_1 = arith.constant 0 : i32
    return %c0_i32, %arg0, %c0_i32_0 : i32, i32, i32
  }
  func.func @transform_1(%arg0: i32) -> (i32, i32) {
    %c0_i32 = arith.constant 0 : i32
    %c0_i32_0 = arith.constant 0 : i32
    %c0_i32_1 = arith.constant 0 : i32
    return %c0_i32, %c0_i32_0 : i32, i32
  }
  func.func @transform_2(%arg0: i32) -> (i32, i32) {
    %c0_i32 = arith.constant 0 : i32
    %c0_i32_0 = arith.constant 0 : i32
    %c0_i32_1 = arith.constant 0 : i32
    return %c0_i32, %c0_i32_0 : i32, i32
  }
  func.func @transform_3(%arg0: i32) -> (i32, i32) {
    %c0_i32 = arith.constant 0 : i32
    %c0_i32_0 = arith.constant 0 : i32
    %c0_i32_1 = arith.constant 0 : i32
    return %c0_i32, %c0_i32_0 : i32, i32
  }
  func.func @transform_4(%arg0: i32) -> (i32, i32) {
    %c0_i32 = arith.constant 0 : i32
    %c0_i32_0 = arith.constant 0 : i32
    %c0_i32_1 = arith.constant 0 : i32
    return %c0_i32, %c0_i32_0 : i32, i32
  }
  func.func @transform_5(%arg0: i32) -> (i32, i32) {
    %c0_i32 = arith.constant 0 : i32
    %c0_i32_0 = arith.constant 0 : i32
    %c0_i32_1 = arith.constant 0 : i32
    return %c0_i32, %c0_i32_0 : i32, i32
  }
  func.func @transform_6(%arg0: i32) -> (i32, i32) {
    %c0_i32 = arith.constant 0 : i32
    %c0_i32_0 = arith.constant 0 : i32
    %c0_i32_1 = arith.constant 0 : i32
    return %c0_i32, %c0_i32_0 : i32, i32
  }
  func.func @transform_7(%arg0: i32) -> (i32, i32, i32) {
    %c0_i32 = arith.constant 0 : i32
    %c0_i32_0 = arith.constant 0 : i32
    %c0_i32_1 = arith.constant 0 : i32
    %c0_i32_2 = arith.constant 0 : i32
    return %c0_i32, %c0_i32_0, %c0_i32_1 : i32, i32, i32
  }
  func.func @transform_8(%arg0: i32) -> (i32, i32) {
    %c0_i32 = arith.constant 0 : i32
    %c0_i32_0 = arith.constant 0 : i32
    %c0_i32_1 = arith.constant 0 : i32
    return %c0_i32, %c0_i32_0 : i32, i32
  }
  func.func @transform_9(%arg0: i32) -> (i32, i32) {
    %c0_i32 = arith.constant 0 : i32
    %c0_i32_0 = arith.constant 0 : i32
    return %arg0, %c0_i32 : i32, i32
  }
}

</mosaic_0001>

<llo_original>
// kernel: lstmad_forward.1
$region0: #{lstmad_forward.1}
  #allocation0 [shape = 'u32[]', space=smem, size = 0x4, offset = 0x4, fixed_abs, tag = 'smem constant byte address 0x4 - core index']
  #allocation1 [shape = 'u32[72,128]{1,0:T(1,128)}', space=vmem, size = 0x9000, scoped, tag = 'internal scratch']
  %s0 = inlined_call_operand.vmem [shape: f32[8,8,4], index: 0, kind: input, shape index: {}]
  %s1 = inlined_call_operand.vmem [shape: f32[4,128], index: 1, kind: input, shape index: {}]
  %s2 = inlined_call_operand.vmem [shape: f32[32,128], index: 2, kind: input, shape index: {}]
  %s3 = inlined_call_operand.vmem [shape: f32[1,128], index: 3, kind: input, shape index: {}]
  %s4 = inlined_call_operand.vmem [shape: f32[32,128], index: 4, kind: input, shape index: {}]
  %s5 = inlined_call_operand.vmem [shape: f32[32,128], index: 5, kind: input, shape index: {}]
  %s6 = inlined_call_operand.vmem [shape: f32[1,128], index: 6, kind: input, shape index: {}]
  %s7 = inlined_call_operand.vmem [shape: f32[8,32,32], index: 7, kind: input, shape index: {}]
  %s8 = inlined_call_operand.vmem [shape: f32[1,32], index: 8, kind: input, shape index: {}]
  %s9 = inlined_call_operand.vmem [shape: f32[8,32], index: 9, kind: output, shape index: {}]
  %s10 = sld [smem:[#allocation0]]
  $region46: #{lstmad_forward.1} parent=0
    _
  %s12 = ssub.s32 1, %s10
  %s13 = scalar_select 0, %s12, %s10
  // Predicated region
  $region2: #{lstmad_forward.1} parent=0 // pred_check
    _
  $region3: #{lstmad_forward.1} parent=0 // pred_check_branch
    %15 = sbr.rel (0) target = $region5
  $region4: #{lstmad_forward.1} parent=0 // pred_region
    _
  $region5: #{lstmad_forward.1} parent=0 // pred_fallthru
    _
  // Predicated region
  $region6: #{lstmad_forward.1} parent=0 // pred_check
    _
  $region7: #{lstmad_forward.1} parent=0 // pred_check_branch
    %17 = sbr.rel (0) target = $region9
  $region8: #{lstmad_forward.1} parent=0 // pred_region
    _
  $region9: #{lstmad_forward.1} parent=0 // pred_fallthru
    _
  // Predicated region
  $region10: #{lstmad_forward.1} parent=0 // pred_check
    _
  $region11: #{lstmad_forward.1} parent=0 // pred_check_branch
    %19 = sbr.rel (0) target = $region13
  $region12: #{lstmad_forward.1} parent=0 // pred_region
    _
  $region13: #{lstmad_forward.1} parent=0 // pred_fallthru
    _
  // Predicated region
  $region14: #{lstmad_forward.1} parent=0 // pred_check
    _
  $region15: #{lstmad_forward.1} parent=0 // pred_check_branch
    %21 = sbr.rel (0) target = $region17
  $region16: #{lstmad_forward.1} parent=0 // pred_region
    _
  $region17: #{lstmad_forward.1} parent=0 // pred_fallthru
    _
  // Predicated region
  $region18: #{lstmad_forward.1} parent=0 // pred_check
    _
  $region19: #{lstmad_forward.1} parent=0 // pred_check_branch
    %23 = sbr.rel (0) target = $region21
  $region20: #{lstmad_forward.1} parent=0 // pred_region
    _
  $region21: #{lstmad_forward.1} parent=0 // pred_fallthru
    _
  // Predicated region
  $region22: #{lstmad_forward.1} parent=0 // pred_check
    _
  $region23: #{lstmad_forward.1} parent=0 // pred_check_branch
    %25 = sbr.rel (0) target = $region25
  $region24: #{lstmad_forward.1} parent=0 // pred_region
    _
  $region25: #{lstmad_forward.1} parent=0 // pred_fallthru
    _
  // Predicated region
  $region26: #{lstmad_forward.1} parent=0 // pred_check
    _
  $region27: #{lstmad_forward.1} parent=0 // pred_check_branch
    %27 = sbr.rel (0) target = $region29
  $region28: #{lstmad_forward.1} parent=0 // pred_region
    _
  $region29: #{lstmad_forward.1} parent=0 // pred_fallthru
    _
  // Predicated region
  $region30: #{lstmad_forward.1} parent=0 // pred_check
    _
  $region31: #{lstmad_forward.1} parent=0 // pred_check_branch
    %29 = sbr.rel (0) target = $region33
  $region32: #{lstmad_forward.1} parent=0 // pred_region
    _
  $region33: #{lstmad_forward.1} parent=0 // pred_fallthru
    _
  // Predicated region
  $region34: #{lstmad_forward.1} parent=0 // pred_check
    _
  $region35: #{lstmad_forward.1} parent=0 // pred_check_branch
    %31 = sbr.rel (0) target = $region37
  $region36: #{lstmad_forward.1} parent=0 // pred_region
    _
  $region37: #{lstmad_forward.1} parent=0 // pred_fallthru
    _
  %v32 = vld [vmem:[%s0] sm:$0xff]
  %s33 = scalar_lea.vmem %s0, 8
  %v34 = vld [vmem:[%s33] sm:$0xff]
  %s35 = scalar_lea.vmem %s0, 16
  %v36 = vld [vmem:[%s35] sm:$0xff]
  %s37 = scalar_lea.vmem %s0, 24
  %v38 = vld [vmem:[%s37] sm:$0xff]
  %s39 = scalar_lea.vmem %s0, 32
  %v40 = vld [vmem:[%s39] sm:$0xff]
  %s41 = scalar_lea.vmem %s0, 40
  %v42 = vld [vmem:[%s41] sm:$0xff]
  %s43 = scalar_lea.vmem %s0, 48
  %v44 = vld [vmem:[%s43] sm:$0xff]
  %s45 = scalar_lea.vmem %s0, 56
  %v46 = vld [vmem:[%s45] sm:$0xff]
  %v47 = vld [vmem:[%s1] sm:$0xf]
  %v48 = vld [vmem:[%s2] sm:$0xff]
  %v49 = vld [vmem:[%s2 + $0x8] sm:$0xff]
  %v50 = vld [vmem:[%s2 + $0x10] sm:$0xff]
  %v51 = vld [vmem:[%s2 + $0x18] sm:$0xff]
  %v52 = vld [vmem:[%s3] sm:$0x1]
  %v54 = vperm.slane %v52, 0
  %vm56 = vcmask 31744
  %v58 = vsel %vm56, %v32, 0
  %vm60 = vcmask 1043456
  %v62 = vsel %vm60, %v47, 0
  %64 = vmatpush.msra.mxu0 0.0
  %65 = vmatpush.msra.mxu0 0.0
  %66 = vmatpush.msra.mxu0 0.0
  %67 = vmatpush.msra.mxu0 0.0
  %68 = vmatpush.msra.mxu0 0.0
  %69 = vmatpush.msra.mxu0 0.0
  %70 = vmatpush.msra.mxu0 0.0
  %71 = vmatpush.msra.mxu0 0.0
  %72 = vmatpush.msra.mxu0 0.0
  %73 = vmatpush.msra.mxu0 0.0
  %74 = vmatpush.msra.mxu0 0.0
  %75 = vmatpush.msra.mxu0 0.0
  %76 = vmatpush.msra.mxu0 0.0
  %77 = vmatpush.msra.mxu0 0.0
  %78 = vmatpush.msra.mxu0 0.0
  %79 = vmatpush.msra.mxu0 %v62
  %80 = vmatmul.f32.gmra.mxu0 %v58
  %v81 = vpop.f32.mrf.mxu0
  %v82 = vadd.f32 %v54, %v81
  %83 = vdwg.mxu0
  %v85 = vsel %vm56, %v34, 0
  %87 = vmatpush.msra.mxu0 0.0
  %88 = vmatpush.msra.mxu0 0.0
  %89 = vmatpush.msra.mxu0 0.0
  %90 = vmatpush.msra.mxu0 0.0
  %91 = vmatpush.msra.mxu0 0.0
  %92 = vmatpush.msra.mxu0 0.0
  %93 = vmatpush.msra.mxu0 0.0
  %94 = vmatpush.msra.mxu0 0.0
  %95 = vmatpush.msra.mxu0 0.0
  %96 = vmatpush.msra.mxu0 0.0
  %97 = vmatpush.msra.mxu0 0.0
  %98 = vmatpush.msra.mxu0 0.0
  %99 = vmatpush.msra.mxu0 0.0
  %100 = vmatpush.msra.mxu0 0.0
  %101 = vmatpush.msra.mxu0 0.0
  %102 = vmatpush.msra.mxu0 %v62
  %103 = vmatmul.f32.gmra.mxu0 %v85
  %v104 = vpop.f32.mrf.mxu0
  %v105 = vadd.f32 %v54, %v104
  %106 = vdwg.mxu0
  %v108 = vsel %vm56, %v36, 0
  %110 = vmatpush.msra.mxu0 0.0
  %111 = vmatpush.msra.mxu0 0.0
  %112 = vmatpush.msra.mxu0 0.0
  %113 = vmatpush.msra.mxu0 0.0
  %114 = vmatpush.msra.mxu0 0.0
  %115 = vmatpush.msra.mxu0 0.0
  %116 = vmatpush.msra.mxu0 0.0
  %117 = vmatpush.msra.mxu0 0.0
  %118 = vmatpush.msra.mxu0 0.0
  %119 = vmatpush.msra.mxu0 0.0
  %120 = vmatpush.msra.mxu0 0.0
  %121 = vmatpush.msra.mxu0 0.0
  %122 = vmatpush.msra.mxu0 0.0
  %123 = vmatpush.msra.mxu0 0.0
  %124 = vmatpush.msra.mxu0 0.0
  %125 = vmatpush.msra.mxu0 %v62
  %126 = vmatmul.f32.gmra.mxu0 %v108
  %v127 = vpop.f32.mrf.mxu0
  %v128 = vadd.f32 %v54, %v127
  %129 = vdwg.mxu0
  %v131 = vsel %vm56, %v38, 0
  %133 = vmatpush.msra.mxu0 0.0
  %134 = vmatpush.msra.mxu0 0.0
  %135 = vmatpush.msra.mxu0 0.0
  %136 = vmatpush.msra.mxu0 0.0
  %137 = vmatpush.msra.mxu0 0.0
  %138 = vmatpush.msra.mxu0 0.0
  %139 = vmatpush.msra.mxu0 0.0
  %140 = vmatpush.msra.mxu0 0.0
  %141 = vmatpush.msra.mxu0 0.0
  %142 = vmatpush.msra.mxu0 0.0
  %143 = vmatpush.msra.mxu0 0.0
  %144 = vmatpush.msra.mxu0 0.0
  %145 = vmatpush.msra.mxu0 0.0
  %146 = vmatpush.msra.mxu0 0.0
  %147 = vmatpush.msra.mxu0 0.0
  %148 = vmatpush.msra.mxu0 %v62
  %149 = vmatmul.f32.gmra.mxu0 %v131
  %v150 = vpop.f32.mrf.mxu0
  %v151 = vadd.f32 %v54, %v150
  %152 = vdwg.mxu0
  %v154 = vsel %vm56, %v40, 0
  %156 = vmatpush.msra.mxu0 0.0
  %157 = vmatpush.msra.mxu0 0.0
  %158 = vmatpush.msra.mxu0 0.0
  %159 = vmatpush.msra.mxu0 0.0
  %160 = vmatpush.msra.mxu0 0.0
  %161 = vmatpush.msra.mxu0 0.0
  %162 = vmatpush.msra.mxu0 0.0
  %163 = vmatpush.msra.mxu0 0.0
  %164 = vmatpush.msra.mxu0 0.0
  %165 = vmatpush.msra.mxu0 0.0
  %166 = vmatpush.msra.mxu0 0.0
  %167 = vmatpush.msra.mxu0 0.0
  %168 = vmatpush.msra.mxu0 0.0
  %169 = vmatpush.msra.mxu0 0.0
  %170 = vmatpush.msra.mxu0 0.0
  %171 = vmatpush.msra.mxu0 %v62
  %172 = vmatmul.f32.gmra.mxu0 %v154
  %v173 = vpop.f32.mrf.mxu0
  %v174 = vadd.f32 %v54, %v173
  %175 = vdwg.mxu0
  %v177 = vsel %vm56, %v42, 0
  %179 = vmatpush.msra.mxu0 0.0
  %180 = vmatpush.msra.mxu0 0.0
  %181 = vmatpush.msra.mxu0 0.0
  %182 = vmatpush.msra.mxu0 0.0
  %183 = vmatpush.msra.mxu0 0.0
  %184 = vmatpush.msra.mxu0 0.0
  %185 = vmatpush.msra.mxu0 0.0
  %186 = vmatpush.msra.mxu0 0.0
  %187 = vmatpush.msra.mxu0 0.0
  %188 = vmatpush.msra.mxu0 0.0
  %189 = vmatpush.msra.mxu0 0.0
  %190 = vmatpush.msra.mxu0 0.0
  %191 = vmatpush.msra.mxu0 0.0
  %192 = vmatpush.msra.mxu0 0.0
  %193 = vmatpush.msra.mxu0 0.0
  %194 = vmatpush.msra.mxu0 %v62
  %195 = vmatmul.f32.gmra.mxu0 %v177
  %v196 = vpop.f32.mrf.mxu0
  %v197 = vadd.f32 %v54, %v196
  %198 = vdwg.mxu0
  %v200 = vsel %vm56, %v44, 0
  %202 = vmatpush.msra.mxu0 0.0
  %203 = vmatpush.msra.mxu0 0.0
  %204 = vmatpush.msra.mxu0 0.0
  %205 = vmatpush.msra.mxu0 0.0
  %206 = vmatpush.msra.mxu0 0.0
  %207 = vmatpush.msra.mxu0 0.0
  %208 = vmatpush.msra.mxu0 0.0
  %209 = vmatpush.msra.mxu0 0.0
  %210 = vmatpush.msra.mxu0 0.0
  %211 = vmatpush.msra.mxu0 0.0
  %212 = vmatpush.msra.mxu0 0.0
  %213 = vmatpush.msra.mxu0 0.0
  %214 = vmatpush.msra.mxu0 0.0
  %215 = vmatpush.msra.mxu0 0.0
  %216 = vmatpush.msra.mxu0 0.0
  %217 = vmatpush.msra.mxu0 %v62
  %218 = vmatmul.f32.gmra.mxu0 %v200
  %v219 = vpop.f32.mrf.mxu0
  %v220 = vadd.f32 %v54, %v219
  %221 = vdwg.mxu0
  %v223 = vsel %vm56, %v46, 0
  %225 = vmatpush.msra.mxu0 0.0
  %226 = vmatpush.msra.mxu0 0.0
  %227 = vmatpush.msra.mxu0 0.0
  %228 = vmatpush.msra.mxu0 0.0
  %229 = vmatpush.msra.mxu0 0.0
  %230 = vmatpush.msra.mxu0 0.0
  %231 = vmatpush.msra.mxu0 0.0
  %232 = vmatpush.msra.mxu0 0.0
  %233 = vmatpush.msra.mxu0 0.0
  %234 = vmatpush.msra.mxu0 0.0
  %235 = vmatpush.msra.mxu0 0.0
  %236 = vmatpush.msra.mxu0 0.0
  %237 = vmatpush.msra.mxu0 0.0
  %238 = vmatpush.msra.mxu0 0.0
  %239 = vmatpush.msra.mxu0 0.0
  %240 = vmatpush.msra.mxu0 %v62
  %241 = vmatmul.f32.gmra.mxu0 %v223
  %v242 = vpop.f32.mrf.mxu0
  %v243 = vadd.f32 %v54, %v242
  %244 = vdwg.mxu0
  %vm245 = vcmask 261120
  %v247 = vsel %vm245, 0.0, 0
  %249 = vmatpush.msra.mxu0 0.0
  %250 = vmatpush.msra.mxu0 0.0
  %251 = vmatpush.msra.mxu0 0.0
  %252 = vmatpush.msra.mxu0 0.0
  %253 = vmatpush.msra.mxu0 0.0
  %254 = vmatpush.msra.mxu0 0.0
  %255 = vmatpush.msra.mxu0 0.0
  %256 = vmatpush.msra.mxu0 0.0
  %257 = vmatpush.msra.mxu0 0.0
  %258 = vmatpush.msra.mxu0 0.0
  %259 = vmatpush.msra.mxu0 0.0
  %260 = vmatpush.msra.mxu0 0.0
  %261 = vmatpush.msra.mxu0 %v51
  %262 = vmatpush.msra.mxu0 %v50
  %263 = vmatpush.msra.mxu0 %v49
  %264 = vmatpush.msra.mxu0 %v48
  %265 = vmatmul.f32.gmra.mxu0 %v247
  %v266 = vpop.f32.mrf.mxu0
  %v267 = vadd.f32 0.0, %v266
  %268 = vdwg.mxu0
  %v269 = vadd.f32 %v82, %v267
  %v270 = vxor.u32 %v269, 2147483648
  %v271 = vmul.f32 %v270, 1.442695
  %v272 = vpow.pop %v271
  %v273 = vadd.f32 %v272, 1.0
  %v274 = vrcp.pop %v273
  %v275 = vmul.f32 %v273, %v274
  %v276 = vsub.f32 1.0, %v275
  %v277 = vmul.f32 %v274, %v276
  %v278 = vadd.f32 %v274, %v277
  %vm279 = vweird.f32 %v273
  %vm280 = vweird.f32 %v274
  %vm281 = vmor %vm279, %vm280
  %v282 = vsel %vm281, %v274, %v278
  %v283 = vand.u32 2147483647, %v273
  %vm284 = vcmp.eq.f32.partialorder %v283, 8.507059e+37
  %v285 = vand.u32 %v273, 2147483648
  %v286 = vor.u32 1.1754944e-38, %v285
  %v287 = vsel %vm284, %v286, %v282
  %v288 = vmul.f32 1.0, %v287
  %v289 = vtanh.pop %v269
  %v290 = vmul.f32 %v288, 0.0
  %292 = vrot.lane.b32.xlu0 %v289, 64
  %v293 = vpop.permute.xlu0 %292
  %v295 = vmul.f32 %v288, %v293
  %297 = vrot.lane.b32.xlu0 %v295, 32
  %v298 = vpop.permute.xlu0 %297
  %v300 = vadd.f32 %v290, %v298
  %v301 = vtanh.pop %v300
  %303 = vrot.lane.b32.xlu0 %v301, 64
  %v304 = vpop.permute.xlu0 %303
  %v306 = vmul.f32 %v288, %v304
  %308 = vrot.lane.b32.xlu0 %v306, 32
  %v309 = vpop.permute.xlu0 %308
  %v310 = vsel %vm245, %v309, 0
  %312 = vmatpush.msra.mxu0 0.0
  %313 = vmatpush.msra.mxu0 0.0
  %314 = vmatpush.msra.mxu0 0.0
  %315 = vmatpush.msra.mxu0 0.0
  %316 = vmatpush.msra.mxu0 0.0
  %317 = vmatpush.msra.mxu0 0.0
  %318 = vmatpush.msra.mxu0 0.0
  %319 = vmatpush.msra.mxu0 0.0
  %320 = vmatpush.msra.mxu0 0.0
  %321 = vmatpush.msra.mxu0 0.0
  %322 = vmatpush.msra.mxu0 0.0
  %323 = vmatpush.msra.mxu0 0.0
  %324 = vmatpush.msra.mxu0 %v51
  %325 = vmatpush.msra.mxu0 %v50
  %326 = vmatpush.msra.mxu0 %v49
  %327 = vmatpush.msra.mxu0 %v48
  %328 = vmatmul.f32.gmra.mxu0 %v310
  %v329 = vpop.f32.mrf.mxu0
  %v330 = vadd.f32 0.0, %v329
  %331 = vdwg.mxu0
  %v332 = vadd.f32 %v105, %v330
  %v333 = vxor.u32 %v332, 2147483648
  %v334 = vmul.f32 %v333, 1.442695
  %v335 = vpow.pop %v334
  %v336 = vadd.f32 %v335, 1.0
  %v337 = vrcp.pop %v336
  %v338 = vmul.f32 %v336, %v337
  %v339 = vsub.f32 1.0, %v338
  %v340 = vmul.f32 %v337, %v339
  %v341 = vadd.f32 %v337, %v340
  %vm342 = vweird.f32 %v336
  %vm343 = vweird.f32 %v337
  %vm344 = vmor %vm342, %vm343
  %v345 = vsel %vm344, %v337, %v341
  %v346 = vand.u32 2147483647, %v336
  %vm347 = vcmp.eq.f32.partialorder %v346, 8.507059e+37
  %v348 = vand.u32 %v336, 2147483648
  %v349 = vor.u32 1.1754944e-38, %v348
  %v350 = vsel %vm347, %v349, %v345
  %v351 = vmul.f32 1.0, %v350
  %v352 = vtanh.pop %v332
  %v353 = vmul.f32 %v351, %v300
  %355 = vrot.lane.b32.xlu0 %v352, 64
  %v356 = vpop.permute.xlu0 %355
  %v358 = vmul.f32 %v351, %v356
  %360 = vrot.lane.b32.xlu0 %v358, 32
  %v361 = vpop.permute.xlu0 %360
  %v363 = vadd.f32 %v353, %v361
  %v364 = vtanh.pop %v363
  %366 = vrot.lane.b32.xlu0 %v364, 64
  %v367 = vpop.permute.xlu0 %366
  %v369 = vmul.f32 %v351, %v367
  %371 = vrot.lane.b32.xlu0 %v369, 32
  %v372 = vpop.permute.xlu0 %371
  %v373 = vsel %vm245, %v372, 0
  %375 = vmatpush.msra.mxu0 0.0
  %376 = vmatpush.msra.mxu0 0.0
  %377 = vmatpush.msra.mxu0 0.0
  %378 = vmatpush.msra.mxu0 0.0
  %379 = vmatpush.msra.mxu0 0.0
  %380 = vmatpush.msra.mxu0 0.0
  %381 = vmatpush.msra.mxu0 0.0
  %382 = vmatpush.msra.mxu0 0.0
  %383 = vmatpush.msra.mxu0 0.0
  %384 = vmatpush.msra.mxu0 0.0
  %385 = vmatpush.msra.mxu0 0.0
  %386 = vmatpush.msra.mxu0 0.0
  %387 = vmatpush.msra.mxu0 %v51
  %388 = vmatpush.msra.mxu0 %v50
  %389 = vmatpush.msra.mxu0 %v49
  %390 = vmatpush.msra.mxu0 %v48
  %391 = vmatmul.f32.gmra.mxu0 %v373
  %v392 = vpop.f32.mrf.mxu0
  %v393 = vadd.f32 0.0, %v392
  %394 = vdwg.mxu0
  %v395 = vadd.f32 %v128, %v393
  %v396 = vxor.u32 %v395, 2147483648
  %v397 = vmul.f32 %v396, 1.442695
  %v398 = vpow.pop %v397
  %v399 = vadd.f32 %v398, 1.0
  %v400 = vrcp.pop %v399
  %v401 = vmul.f32 %v399, %v400
  %v402 = vsub.f32 1.0, %v401
  %v403 = vmul.f32 %v400, %v402
  %v404 = vadd.f32 %v400, %v403
  %vm405 = vweird.f32 %v399
  %vm406 = vweird.f32 %v400
  %vm407 = vmor %vm405, %vm406
  %v408 = vsel %vm407, %v400, %v404
  %v409 = vand.u32 2147483647, %v399
  %vm410 = vcmp.eq.f32.partialorder %v409, 8.507059e+37
  %v411 = vand.u32 %v399, 2147483648
  %v412 = vor.u32 1.1754944e-38, %v411
  %v413 = vsel %vm410, %v412, %v408
  %v414 = vmul.f32 1.0, %v413
  %v415 = vtanh.pop %v395
  %v416 = vmul.f32 %v414, %v363
  %418 = vrot.lane.b32.xlu0 %v415, 64
  %v419 = vpop.permute.xlu0 %418
  %v421 = vmul.f32 %v414, %v419
  %423 = vrot.lane.b32.xlu0 %v421, 32
  %v424 = vpop.permute.xlu0 %423
  %v426 = vadd.f32 %v416, %v424
  %v427 = vtanh.pop %v426
  %429 = vrot.lane.b32.xlu0 %v427, 64
  %v430 = vpop.permute.xlu0 %429
  %v432 = vmul.f32 %v414, %v430
  %434 = vrot.lane.b32.xlu0 %v432, 32
  %v435 = vpop.permute.xlu0 %434
  %v436 = vsel %vm245, %v435, 0
  %438 = vmatpush.msra.mxu0 0.0
  %439 = vmatpush.msra.mxu0 0.0
  %440 = vmatpush.msra.mxu0 0.0
  %441 = vmatpush.msra.mxu0 0.0
  %442 = vmatpush.msra.mxu0 0.0
  %443 = vmatpush.msra.mxu0 0.0
  %444 = vmatpush.msra.mxu0 0.0
  %445 = vmatpush.msra.mxu0 0.0
  %446 = vmatpush.msra.mxu0 0.0
  %447 = vmatpush.msra.mxu0 0.0
  %448 = vmatpush.msra.mxu0 0.0
  %449 = vmatpush.msra.mxu0 0.0
  %450 = vmatpush.msra.mxu0 %v51
  %451 = vmatpush.msra.mxu0 %v50
  %452 = vmatpush.msra.mxu0 %v49
  %453 = vmatpush.msra.mxu0 %v48
  %454 = vmatmul.f32.gmra.mxu0 %v436
  %v455 = vpop.f32.mrf.mxu0
  %v456 = vadd.f32 0.0, %v455
  %457 = vdwg.mxu0
  %v458 = vadd.f32 %v151, %v456
  %v459 = vxor.u32 %v458, 2147483648
  %v460 = vmul.f32 %v459, 1.442695
  %v461 = vpow.pop %v460
  %v462 = vadd.f32 %v461, 1.0
  %v463 = vrcp.pop %v462
  %v464 = vmul.f32 %v462, %v463
  %v465 = vsub.f32 1.0, %v464
  %v466 = vmul.f32 %v463, %v465
  %v467 = vadd.f32 %v463, %v466
  %vm468 = vweird.f32 %v462
  %vm469 = vweird.f32 %v463
  %vm470 = vmor %vm468, %vm469
  %v471 = vsel %vm470, %v463, %v467
  %v472 = vand.u32 2147483647, %v462
  %vm473 = vcmp.eq.f32.partialorder %v472, 8.507059e+37
  %v474 = vand.u32 %v462, 2147483648
  %v475 = vor.u32 1.1754944e-38, %v474
  %v476 = vsel %vm473, %v475, %v471
  %v477 = vmul.f32 1.0, %v476
  %v478 = vtanh.pop %v458
  %v479 = vmul.f32 %v477, %v426
  %481 = vrot.lane.b32.xlu0 %v478, 64
  %v482 = vpop.permute.xlu0 %481
  %v484 = vmul.f32 %v477, %v482
  %486 = vrot.lane.b32.xlu0 %v484, 32
  %v487 = vpop.permute.xlu0 %486
  %v489 = vadd.f32 %v479, %v487
  %v490 = vtanh.pop %v489
  %492 = vrot.lane.b32.xlu0 %v490, 64
  %v493 = vpop.permute.xlu0 %492
  %v495 = vmul.f32 %v477, %v493
  %497 = vrot.lane.b32.xlu0 %v495, 32
  %v498 = vpop.permute.xlu0 %497
  %v499 = vsel %vm245, %v498, 0
  %501 = vmatpush.msra.mxu0 0.0
  %502 = vmatpush.msra.mxu0 0.0
  %503 = vmatpush.msra.mxu0 0.0
  %504 = vmatpush.msra.mxu0 0.0
  %505 = vmatpush.msra.mxu0 0.0
  %506 = vmatpush.msra.mxu0 0.0
  %507 = vmatpush.msra.mxu0 0.0
  %508 = vmatpush.msra.mxu0 0.0
  %509 = vmatpush.msra.mxu0 0.0
  %510 = vmatpush.msra.mxu0 0.0
  %511 = vmatpush.msra.mxu0 0.0
  %512 = vmatpush.msra.mxu0 0.0
  %513 = vmatpush.msra.mxu0 %v51
  %514 = vmatpush.msra.mxu0 %v50
  %515 = vmatpush.msra.mxu0 %v49
  %516 = vmatpush.msra.mxu0 %v48
  %517 = vmatmul.f32.gmra.mxu0 %v499
  %v518 = vpop.f32.mrf.mxu0
  %v519 = vadd.f32 0.0, %v518
  %520 = vdwg.mxu0
  %v521 = vadd.f32 %v174, %v519
  %v522 = vxor.u32 %v521, 2147483648
  %v523 = vmul.f32 %v522, 1.442695
  %v524 = vpow.pop %v523
  %v525 = vadd.f32 %v524, 1.0
  %v526 = vrcp.pop %v525
  %v527 = vmul.f32 %v525, %v526
  %v528 = vsub.f32 1.0, %v527
  %v529 = vmul.f32 %v526, %v528
  %v530 = vadd.f32 %v526, %v529
  %vm531 = vweird.f32 %v525
  %vm532 = vweird.f32 %v526
  %vm533 = vmor %vm531, %vm532
  %v534 = vsel %vm533, %v526, %v530
  %v535 = vand.u32 2147483647, %v525
  %vm536 = vcmp.eq.f32.partialorder %v535, 8.507059e+37
  %v537 = vand.u32 %v525, 2147483648
  %v538 = vor.u32 1.1754944e-38, %v537
  %v539 = vsel %vm536, %v538, %v534
  %v540 = vmul.f32 1.0, %v539
  %v541 = vtanh.pop %v521
  %v542 = vmul.f32 %v540, %v489
  %544 = vrot.lane.b32.xlu0 %v541, 64
  %v545 = vpop.permute.xlu0 %544
  %v547 = vmul.f32 %v540, %v545
  %549 = vrot.lane.b32.xlu0 %v547, 32
  %v550 = vpop.permute.xlu0 %549
  %v552 = vadd.f32 %v542, %v550
  %v553 = vtanh.pop %v552
  %555 = vrot.lane.b32.xlu0 %v553, 64
  %v556 = vpop.permute.xlu0 %555
  %v558 = vmul.f32 %v540, %v556
  %560 = vrot.lane.b32.xlu0 %v558, 32
  %v561 = vpop.permute.xlu0 %560
  %v562 = vsel %vm245, %v561, 0
  %564 = vmatpush.msra.mxu0 0.0
  %565 = vmatpush.msra.mxu0 0.0
  %566 = vmatpush.msra.mxu0 0.0
  %567 = vmatpush.msra.mxu0 0.0
  %568 = vmatpush.msra.mxu0 0.0
  %569 = vmatpush.msra.mxu0 0.0
  %570 = vmatpush.msra.mxu0 0.0
  %571 = vmatpush.msra.mxu0 0.0
  %572 = vmatpush.msra.mxu0 0.0
  %573 = vmatpush.msra.mxu0 0.0
  %574 = vmatpush.msra.mxu0 0.0
  %575 = vmatpush.msra.mxu0 0.0
  %576 = vmatpush.msra.mxu0 %v51
  %577 = vmatpush.msra.mxu0 %v50
  %578 = vmatpush.msra.mxu0 %v49
  %579 = vmatpush.msra.mxu0 %v48
  %580 = vmatmul.f32.gmra.mxu0 %v562
  %v581 = vpop.f32.mrf.mxu0
  %v582 = vadd.f32 0.0, %v581
  %583 = vdwg.mxu0
  %v584 = vadd.f32 %v197, %v582
  %v585 = vxor.u32 %v584, 2147483648
  %v586 = vmul.f32 %v585, 1.442695
  %v587 = vpow.pop %v586
  %v588 = vadd.f32 %v587, 1.0
  %v589 = vrcp.pop %v588
  %v590 = vmul.f32 %v588, %v589
  %v591 = vsub.f32 1.0, %v590
  %v592 = vmul.f32 %v589, %v591
  %v593 = vadd.f32 %v589, %v592
  %vm594 = vweird.f32 %v588
  %vm595 = vweird.f32 %v589
  %vm596 = vmor %vm594, %vm595
  %v597 = vsel %vm596, %v589, %v593
  %v598 = vand.u32 2147483647, %v588
  %vm599 = vcmp.eq.f32.partialorder %v598, 8.507059e+37
  %v600 = vand.u32 %v588, 2147483648
  %v601 = vor.u32 1.1754944e-38, %v600
  %v602 = vsel %vm599, %v601, %v597
  %v603 = vmul.f32 1.0, %v602
  %v604 = vtanh.pop %v584
  %v605 = vmul.f32 %v603, %v552
  %607 = vrot.lane.b32.xlu0 %v604, 64
  %v608 = vpop.permute.xlu0 %607
  %v610 = vmul.f32 %v603, %v608
  %612 = vrot.lane.b32.xlu0 %v610, 32
  %v613 = vpop.permute.xlu0 %612
  %v615 = vadd.f32 %v605, %v613
  %v616 = vtanh.pop %v615
  %618 = vrot.lane.b32.xlu0 %v616, 64
  %v619 = vpop.permute.xlu0 %618
  %v621 = vmul.f32 %v603, %v619
  %623 = vrot.lane.b32.xlu0 %v621, 32
  %v624 = vpop.permute.xlu0 %623
  %v625 = vsel %vm245, %v624, 0
  %627 = vmatpush.msra.mxu0 0.0
  %628 = vmatpush.msra.mxu0 0.0
  %629 = vmatpush.msra.mxu0 0.0
  %630 = vmatpush.msra.mxu0 0.0
  %631 = vmatpush.msra.mxu0 0.0
  %632 = vmatpush.msra.mxu0 0.0
  %633 = vmatpush.msra.mxu0 0.0
  %634 = vmatpush.msra.mxu0 0.0
  %635 = vmatpush.msra.mxu0 0.0
  %636 = vmatpush.msra.mxu0 0.0
  %637 = vmatpush.msra.mxu0 0.0
  %638 = vmatpush.msra.mxu0 0.0
  %639 = vmatpush.msra.mxu0 %v51
  %640 = vmatpush.msra.mxu0 %v50
  %641 = vmatpush.msra.mxu0 %v49
  %642 = vmatpush.msra.mxu0 %v48
  %643 = vmatmul.f32.gmra.mxu0 %v625
  %v644 = vpop.f32.mrf.mxu0
  %v645 = vadd.f32 0.0, %v644
  %646 = vdwg.mxu0
  %v647 = vadd.f32 %v220, %v645
  %v648 = vxor.u32 %v647, 2147483648
  %v649 = vmul.f32 %v648, 1.442695
  %v650 = vpow.pop %v649
  %v651 = vadd.f32 %v650, 1.0
  %v652 = vrcp.pop %v651
  %v653 = vmul.f32 %v651, %v652
  %v654 = vsub.f32 1.0, %v653
  %v655 = vmul.f32 %v652, %v654
  %v656 = vadd.f32 %v652, %v655
  %vm657 = vweird.f32 %v651
  %vm658 = vweird.f32 %v652
  %vm659 = vmor %vm657, %vm658
  %v660 = vsel %vm659, %v652, %v656
  %v661 = vand.u32 2147483647, %v651
  %vm662 = vcmp.eq.f32.partialorder %v661, 8.507059e+37
  %v663 = vand.u32 %v651, 2147483648
  %v664 = vor.u32 1.1754944e-38, %v663
  %v665 = vsel %vm662, %v664, %v660
  %v666 = vmul.f32 1.0, %v665
  %v667 = vtanh.pop %v647
  %v668 = vmul.f32 %v666, %v615
  %670 = vrot.lane.b32.xlu0 %v667, 64
  %v671 = vpop.permute.xlu0 %670
  %v673 = vmul.f32 %v666, %v671
  %675 = vrot.lane.b32.xlu0 %v673, 32
  %v676 = vpop.permute.xlu0 %675
  %v678 = vadd.f32 %v668, %v676
  %v679 = vtanh.pop %v678
  %681 = vrot.lane.b32.xlu0 %v679, 64
  %v682 = vpop.permute.xlu0 %681
  %v684 = vmul.f32 %v666, %v682
  %686 = vrot.lane.b32.xlu0 %v684, 32
  %v687 = vpop.permute.xlu0 %686
  %v688 = vsel %vm245, %v687, 0
  %690 = vmatpush.msra.mxu0 0.0
  %691 = vmatpush.msra.mxu0 0.0
  %692 = vmatpush.msra.mxu0 0.0
  %693 = vmatpush.msra.mxu0 0.0
  %694 = vmatpush.msra.mxu0 0.0
  %695 = vmatpush.msra.mxu0 0.0
  %696 = vmatpush.msra.mxu0 0.0
  %697 = vmatpush.msra.mxu0 0.0
  %698 = vmatpush.msra.mxu0 0.0
  %699 = vmatpush.msra.mxu0 0.0
  %700 = vmatpush.msra.mxu0 0.0
  %701 = vmatpush.msra.mxu0 0.0
  %702 = vmatpush.msra.mxu0 %v51
  %703 = vmatpush.msra.mxu0 %v50
  %704 = vmatpush.msra.mxu0 %v49
  %705 = vmatpush.msra.mxu0 %v48
  %706 = vmatmul.f32.gmra.mxu0 %v688
  %v707 = vpop.f32.mrf.mxu0
  %v708 = vadd.f32 0.0, %v707
  %709 = vdwg.mxu0
  %v710 = vadd.f32 %v243, %v708
  %v711 = vxor.u32 %v710, 2147483648
  %v712 = vmul.f32 %v711, 1.442695
  %v713 = vpow.pop %v712
  %v714 = vadd.f32 %v713, 1.0
  %v715 = vrcp.pop %v714
  %v716 = vmul.f32 %v714, %v715
  %v717 = vsub.f32 1.0, %v716
  %v718 = vmul.f32 %v715, %v717
  %v719 = vadd.f32 %v715, %v718
  %vm720 = vweird.f32 %v714
  %vm721 = vweird.f32 %v715
  %vm722 = vmor %vm720, %vm721
  %v723 = vsel %vm722, %v715, %v719
  %v724 = vand.u32 2147483647, %v714
  %vm725 = vcmp.eq.f32.partialorder %v724, 8.507059e+37
  %v726 = vand.u32 %v714, 2147483648
  %v727 = vor.u32 1.1754944e-38, %v726
  %v728 = vsel %vm725, %v727, %v723
  %v729 = vmul.f32 1.0, %v728
  %v730 = vtanh.pop %v710
  %v731 = vmul.f32 %v729, %v678
  %733 = vrot.lane.b32.xlu0 %v730, 64
  %v734 = vpop.permute.xlu0 %733
  %v736 = vmul.f32 %v729, %v734
  %738 = vrot.lane.b32.xlu0 %v736, 32
  %v739 = vpop.permute.xlu0 %738
  %v741 = vadd.f32 %v731, %v739
  %v742 = vtanh.pop %v741
  %744 = vrot.lane.b32.xlu0 %v742, 64
  %v745 = vpop.permute.xlu0 %744
  %v747 = vmul.f32 %v729, %v745
  %v748 = vld [vmem:[%s4] sm:$0xff]
  %v749 = vld [vmem:[%s4 + $0x8] sm:$0xff]
  %v750 = vld [vmem:[%s4 + $0x10] sm:$0xff]
  %v751 = vld [vmem:[%s4 + $0x18] sm:$0xff]
  %v752 = vld [vmem:[%s5] sm:$0xff]
  %v753 = vld [vmem:[%s5 + $0x8] sm:$0xff]
  %v754 = vld [vmem:[%s5 + $0x10] sm:$0xff]
  %v755 = vld [vmem:[%s5 + $0x18] sm:$0xff]
  %v756 = vld [vmem:[%s6] sm:$0x1]
  %v758 = vperm.slane %v756, 0
  %760 = vmatpush.msra.mxu0 0.0
  %761 = vmatpush.msra.mxu0 0.0
  %762 = vmatpush.msra.mxu0 0.0
  %763 = vmatpush.msra.mxu0 0.0
  %764 = vmatpush.msra.mxu0 0.0
  %765 = vmatpush.msra.mxu0 0.0
  %766 = vmatpush.msra.mxu0 0.0
  %767 = vmatpush.msra.mxu0 0.0
  %768 = vmatpush.msra.mxu0 0.0
  %769 = vmatpush.msra.mxu0 0.0
  %770 = vmatpush.msra.mxu0 0.0
  %771 = vmatpush.msra.mxu0 0.0
  %772 = vmatpush.msra.mxu0 %v751
  %773 = vmatpush.msra.mxu0 %v750
  %774 = vmatpush.msra.mxu0 %v749
  %775 = vmatpush.msra.mxu0 %v748
  %776 = vmatmul.f32.gmra.mxu0 %v310
  %v777 = vpop.f32.mrf.mxu0
  %v778 = vadd.f32 %v758, %v777
  %779 = vdwg.mxu0
  %780 = vmatpush.msra.mxu0 0.0
  %781 = vmatpush.msra.mxu0 0.0
  %782 = vmatpush.msra.mxu0 0.0
  %783 = vmatpush.msra.mxu0 0.0
  %784 = vmatpush.msra.mxu0 0.0
  %785 = vmatpush.msra.mxu0 0.0
  %786 = vmatpush.msra.mxu0 0.0
  %787 = vmatpush.msra.mxu0 0.0
  %788 = vmatpush.msra.mxu0 0.0
  %789 = vmatpush.msra.mxu0 0.0
  %790 = vmatpush.msra.mxu0 0.0
  %791 = vmatpush.msra.mxu0 0.0
  %792 = vmatpush.msra.mxu0 %v751
  %793 = vmatpush.msra.mxu0 %v750
  %794 = vmatpush.msra.mxu0 %v749
  %795 = vmatpush.msra.mxu0 %v748
  %796 = vmatmul.f32.gmra.mxu0 %v373
  %v797 = vpop.f32.mrf.mxu0
  %v798 = vadd.f32 %v758, %v797
  %799 = vdwg.mxu0
  %800 = vmatpush.msra.mxu0 0.0
  %801 = vmatpush.msra.mxu0 0.0
  %802 = vmatpush.msra.mxu0 0.0
  %803 = vmatpush.msra.mxu0 0.0
  %804 = vmatpush.msra.mxu0 0.0
  %805 = vmatpush.msra.mxu0 0.0
  %806 = vmatpush.msra.mxu0 0.0
  %807 = vmatpush.msra.mxu0 0.0
  %808 = vmatpush.msra.mxu0 0.0
  %809 = vmatpush.msra.mxu0 0.0
  %810 = vmatpush.msra.mxu0 0.0
  %811 = vmatpush.msra.mxu0 0.0
  %812 = vmatpush.msra.mxu0 %v751
  %813 = vmatpush.msra.mxu0 %v750
  %814 = vmatpush.msra.mxu0 %v749
  %815 = vmatpush.msra.mxu0 %v748
  %816 = vmatmul.f32.gmra.mxu0 %v436
  %v817 = vpop.f32.mrf.mxu0
  %v818 = vadd.f32 %v758, %v817
  %819 = vdwg.mxu0
  %820 = vmatpush.msra.mxu0 0.0
  %821 = vmatpush.msra.mxu0 0.0
  %822 = vmatpush.msra.mxu0 0.0
  %823 = vmatpush.msra.mxu0 0.0
  %824 = vmatpush.msra.mxu0 0.0
  %825 = vmatpush.msra.mxu0 0.0
  %826 = vmatpush.msra.mxu0 0.0
  %827 = vmatpush.msra.mxu0 0.0
  %828 = vmatpush.msra.mxu0 0.0
  %829 = vmatpush.msra.mxu0 0.0
  %830 = vmatpush.msra.mxu0 0.0
  %831 = vmatpush.msra.mxu0 0.0
  %832 = vmatpush.msra.mxu0 %v751
  %833 = vmatpush.msra.mxu0 %v750
  %834 = vmatpush.msra.mxu0 %v749
  %835 = vmatpush.msra.mxu0 %v748
  %836 = vmatmul.f32.gmra.mxu0 %v499
  %v837 = vpop.f32.mrf.mxu0
  %v838 = vadd.f32 %v758, %v837
  %839 = vdwg.mxu0
  %840 = vmatpush.msra.mxu0 0.0
  %841 = vmatpush.msra.mxu0 0.0
  %842 = vmatpush.msra.mxu0 0.0
  %843 = vmatpush.msra.mxu0 0.0
  %844 = vmatpush.msra.mxu0 0.0
  %845 = vmatpush.msra.mxu0 0.0
  %846 = vmatpush.msra.mxu0 0.0
  %847 = vmatpush.msra.mxu0 0.0
  %848 = vmatpush.msra.mxu0 0.0
  %849 = vmatpush.msra.mxu0 0.0
  %850 = vmatpush.msra.mxu0 0.0
  %851 = vmatpush.msra.mxu0 0.0
  %852 = vmatpush.msra.mxu0 %v751
  %853 = vmatpush.msra.mxu0 %v750
  %854 = vmatpush.msra.mxu0 %v749
  %855 = vmatpush.msra.mxu0 %v748
  %856 = vmatmul.f32.gmra.mxu0 %v562
  %v857 = vpop.f32.mrf.mxu0
  %v858 = vadd.f32 %v758, %v857
  %859 = vdwg.mxu0
  %860 = vmatpush.msra.mxu0 0.0
  %861 = vmatpush.msra.mxu0 0.0
  %862 = vmatpush.msra.mxu0 0.0
  %863 = vmatpush.msra.mxu0 0.0
  %864 = vmatpush.msra.mxu0 0.0
  %865 = vmatpush.msra.mxu0 0.0
  %866 = vmatpush.msra.mxu0 0.0
  %867 = vmatpush.msra.mxu0 0.0
  %868 = vmatpush.msra.mxu0 0.0
  %869 = vmatpush.msra.mxu0 0.0
  %870 = vmatpush.msra.mxu0 0.0
  %871 = vmatpush.msra.mxu0 0.0
  %872 = vmatpush.msra.mxu0 %v751
  %873 = vmatpush.msra.mxu0 %v750
  %874 = vmatpush.msra.mxu0 %v749
  %875 = vmatpush.msra.mxu0 %v748
  %876 = vmatmul.f32.gmra.mxu0 %v625
  %v877 = vpop.f32.mrf.mxu0
  %v878 = vadd.f32 %v758, %v877
  %879 = vdwg.mxu0
  %880 = vmatpush.msra.mxu0 0.0
  %881 = vmatpush.msra.mxu0 0.0
  %882 = vmatpush.msra.mxu0 0.0
  %883 = vmatpush.msra.mxu0 0.0
  %884 = vmatpush.msra.mxu0 0.0
  %885 = vmatpush.msra.mxu0 0.0
  %886 = vmatpush.msra.mxu0 0.0
  %887 = vmatpush.msra.mxu0 0.0
  %888 = vmatpush.msra.mxu0 0.0
  %889 = vmatpush.msra.mxu0 0.0
  %890 = vmatpush.msra.mxu0 0.0
  %891 = vmatpush.msra.mxu0 0.0
  %892 = vmatpush.msra.mxu0 %v751
  %893 = vmatpush.msra.mxu0 %v750
  %894 = vmatpush.msra.mxu0 %v749
  %895 = vmatpush.msra.mxu0 %v748
  %896 = vmatmul.f32.gmra.mxu0 %v688
  %v897 = vpop.f32.mrf.mxu0
  %v898 = vadd.f32 %v758, %v897
  %899 = vdwg.mxu0
  %901 = vrot.lane.b32.xlu0 %v747, 32
  %v902 = vpop.permute.xlu0 %901
  %v903 = vsel %vm245, %v902, 0
  %905 = vmatpush.msra.mxu0 0.0
  %906 = vmatpush.msra.mxu0 0.0
  %907 = vmatpush.msra.mxu0 0.0
  %908 = vmatpush.msra.mxu0 0.0
  %909 = vmatpush.msra.mxu0 0.0
  %910 = vmatpush.msra.mxu0 0.0
  %911 = vmatpush.msra.mxu0 0.0
  %912 = vmatpush.msra.mxu0 0.0
  %913 = vmatpush.msra.mxu0 0.0
  %914 = vmatpush.msra.mxu0 0.0
  %915 = vmatpush.msra.mxu0 0.0
  %916 = vmatpush.msra.mxu0 0.0
  %917 = vmatpush.msra.mxu0 %v751
  %918 = vmatpush.msra.mxu0 %v750
  %919 = vmatpush.msra.mxu0 %v749
  %920 = vmatpush.msra.mxu0 %v748
  %921 = vmatmul.f32.gmra.mxu0 %v903
  %v922 = vpop.f32.mrf.mxu0
  %v923 = vadd.f32 %v758, %v922
  %924 = vdwg.mxu0
  %925 = vmatpush.msra.mxu0 0.0
  %926 = vmatpush.msra.mxu0 0.0
  %927 = vmatpush.msra.mxu0 0.0
  %928 = vmatpush.msra.mxu0 0.0
  %929 = vmatpush.msra.mxu0 0.0
  %930 = vmatpush.msra.mxu0 0.0
  %931 = vmatpush.msra.mxu0 0.0
  %932 = vmatpush.msra.mxu0 0.0
  %933 = vmatpush.msra.mxu0 0.0
  %934 = vmatpush.msra.mxu0 0.0
  %935 = vmatpush.msra.mxu0 0.0
  %936 = vmatpush.msra.mxu0 0.0
  %937 = vmatpush.msra.mxu0 %v755
  %938 = vmatpush.msra.mxu0 %v754
  %939 = vmatpush.msra.mxu0 %v753
  %940 = vmatpush.msra.mxu0 %v752
  %941 = vmatmul.f32.gmra.mxu0 %v247
  %v942 = vpop.f32.mrf.mxu0
  %v943 = vadd.f32 0.0, %v942
  %944 = vdwg.mxu0
  %v945 = vadd.f32 %v778, %v943
  %v946 = vxor.u32 %v945, 2147483648
  %v947 = vmul.f32 %v946, 1.442695
  %v948 = vpow.pop %v947
  %v949 = vadd.f32 %v948, 1.0
  %v950 = vrcp.pop %v949
  %v951 = vmul.f32 %v949, %v950
  %v952 = vsub.f32 1.0, %v951
  %v953 = vmul.f32 %v950, %v952
  %v954 = vadd.f32 %v950, %v953
  %vm955 = vweird.f32 %v949
  %vm956 = vweird.f32 %v950
  %vm957 = vmor %vm955, %vm956
  %v958 = vsel %vm957, %v950, %v954
  %v959 = vand.u32 2147483647, %v949
  %vm960 = vcmp.eq.f32.partialorder %v959, 8.507059e+37
  %v961 = vand.u32 %v949, 2147483648
  %v962 = vor.u32 1.1754944e-38, %v961
  %v963 = vsel %vm960, %v962, %v958
  %v964 = vmul.f32 1.0, %v963
  %v965 = vtanh.pop %v945
  %v966 = vmul.f32 %v964, 0.0
  %968 = vrot.lane.b32.xlu0 %v965, 64
  %v969 = vpop.permute.xlu0 %968
  %v971 = vmul.f32 %v964, %v969
  %973 = vrot.lane.b32.xlu0 %v971, 32
  %v974 = vpop.permute.xlu0 %973
  %v976 = vadd.f32 %v966, %v974
  %v977 = vtanh.pop %v976
  %979 = vrot.lane.b32.xlu0 %v977, 64
  %v980 = vpop.permute.xlu0 %979
  %v982 = vmul.f32 %v964, %v980
  %984 = vrot.lane.b32.xlu0 %v982, 32
  %v985 = vpop.permute.xlu0 %984
  %v986 = vsel %vm245, %v985, 0
  %988 = vmatpush.msra.mxu0 0.0
  %989 = vmatpush.msra.mxu0 0.0
  %990 = vmatpush.msra.mxu0 0.0
  %991 = vmatpush.msra.mxu0 0.0
  %992 = vmatpush.msra.mxu0 0.0
  %993 = vmatpush.msra.mxu0 0.0
  %994 = vmatpush.msra.mxu0 0.0
  %995 = vmatpush.msra.mxu0 0.0
  %996 = vmatpush.msra.mxu0 0.0
  %997 = vmatpush.msra.mxu0 0.0
  %998 = vmatpush.msra.mxu0 0.0
  %999 = vmatpush.msra.mxu0 0.0
  %1000 = vmatpush.msra.mxu0 %v755
  %1001 = vmatpush.msra.mxu0 %v754
  %1002 = vmatpush.msra.mxu0 %v753
  %1003 = vmatpush.msra.mxu0 %v752
  %1004 = vmatmul.f32.gmra.mxu0 %v986
  %v1005 = vpop.f32.mrf.mxu0
  %v1006 = vadd.f32 0.0, %v1005
  %1007 = vdwg.mxu0
  %v1008 = vadd.f32 %v798, %v1006
  %v1009 = vxor.u32 %v1008, 2147483648
  %v1010 = vmul.f32 %v1009, 1.442695
  %v1011 = vpow.pop %v1010
  %v1012 = vadd.f32 %v1011, 1.0
  %v1013 = vrcp.pop %v1012
  %v1014 = vmul.f32 %v1012, %v1013
  %v1015 = vsub.f32 1.0, %v1014
  %v1016 = vmul.f32 %v1013, %v1015
  %v1017 = vadd.f32 %v1013, %v1016
  %vm1018 = vweird.f32 %v1012
  %vm1019 = vweird.f32 %v1013
  %vm1020 = vmor %vm1018, %vm1019
  %v1021 = vsel %vm1020, %v1013, %v1017
  %v1022 = vand.u32 2147483647, %v1012
  %vm1023 = vcmp.eq.f32.partialorder %v1022, 8.507059e+37
  %v1024 = vand.u32 %v1012, 2147483648
  %v1025 = vor.u32 1.1754944e-38, %v1024
  %v1026 = vsel %vm1023, %v1025, %v1021
  %v1027 = vmul.f32 1.0, %v1026
  %v1028 = vtanh.pop %v1008
  %v1029 = vmul.f32 %v1027, %v976
  %1031 = vrot.lane.b32.xlu0 %v1028, 64
  %v1032 = vpop.permute.xlu0 %1031
  %v1034 = vmul.f32 %v1027, %v1032
  %1036 = vrot.lane.b32.xlu0 %v1034, 32
  %v1037 = vpop.permute.xlu0 %1036
  %v1039 = vadd.f32 %v1029, %v1037
  %v1040 = vtanh.pop %v1039
  %1042 = vrot.lane.b32.xlu0 %v1040, 64
  %v1043 = vpop.permute.xlu0 %1042
  %v1045 = vmul.f32 %v1027, %v1043
  %1047 = vrot.lane.b32.xlu0 %v1045, 32
  %v1048 = vpop.permute.xlu0 %1047
  %v1049 = vsel %vm245, %v1048, 0
  %1051 = vmatpush.msra.mxu0 0.0
  %1052 = vmatpush.msra.mxu0 0.0
  %1053 = vmatpush.msra.mxu0 0.0
  %1054 = vmatpush.msra.mxu0 0.0
  %1055 = vmatpush.msra.mxu0 0.0
  %1056 = vmatpush.msra.mxu0 0.0
  %1057 = vmatpush.msra.mxu0 0.0
  %1058 = vmatpush.msra.mxu0 0.0
  %1059 = vmatpush.msra.mxu0 0.0
  %1060 = vmatpush.msra.mxu0 0.0
  %1061 = vmatpush.msra.mxu0 0.0
  %1062 = vmatpush.msra.mxu0 0.0
  %1063 = vmatpush.msra.mxu0 %v755
  %1064 = vmatpush.msra.mxu0 %v754
  %1065 = vmatpush.msra.mxu0 %v753
  %1066 = vmatpush.msra.mxu0 %v752
  %1067 = vmatmul.f32.gmra.mxu0 %v1049
  %v1068 = vpop.f32.mrf.mxu0
  %v1069 = vadd.f32 0.0, %v1068
  %1070 = vdwg.mxu0
  %v1071 = vadd.f32 %v818, %v1069
  %v1072 = vxor.u32 %v1071, 2147483648
  %v1073 = vmul.f32 %v1072, 1.442695
  %v1074 = vpow.pop %v1073
  %v1075 = vadd.f32 %v1074, 1.0
  %v1076 = vrcp.pop %v1075
  %v1077 = vmul.f32 %v1075, %v1076
  %v1078 = vsub.f32 1.0, %v1077
  %v1079 = vmul.f32 %v1076, %v1078
  %v1080 = vadd.f32 %v1076, %v1079
  %vm1081 = vweird.f32 %v1075
  %vm1082 = vweird.f32 %v1076
  %vm1083 = vmor %vm1081, %vm1082
  %v1084 = vsel %vm1083, %v1076, %v1080
  %v1085 = vand.u32 2147483647, %v1075
  %vm1086 = vcmp.eq.f32.partialorder %v1085, 8.507059e+37
  %v1087 = vand.u32 %v1075, 2147483648
  %v1088 = vor.u32 1.1754944e-38, %v1087
  %v1089 = vsel %vm1086, %v1088, %v1084
  %v1090 = vmul.f32 1.0, %v1089
  %v1091 = vtanh.pop %v1071
  %v1092 = vmul.f32 %v1090, %v1039
  %1094 = vrot.lane.b32.xlu0 %v1091, 64
  %v1095 = vpop.permute.xlu0 %1094
  %v1097 = vmul.f32 %v1090, %v1095
  %1099 = vrot.lane.b32.xlu0 %v1097, 32
  %v1100 = vpop.permute.xlu0 %1099
  %v1102 = vadd.f32 %v1092, %v1100
  %v1103 = vtanh.pop %v1102
  %1105 = vrot.lane.b32.xlu0 %v1103, 64
  %v1106 = vpop.permute.xlu0 %1105
  %v1108 = vmul.f32 %v1090, %v1106
  %1110 = vrot.lane.b32.xlu0 %v1108, 32
  %v1111 = vpop.permute.xlu0 %1110
  %v1112 = vsel %vm245, %v1111, 0
  %1114 = vmatpush.msra.mxu0 0.0
  %1115 = vmatpush.msra.mxu0 0.0
  %1116 = vmatpush.msra.mxu0 0.0
  %1117 = vmatpush.msra.mxu0 0.0
  %1118 = vmatpush.msra.mxu0 0.0
  %1119 = vmatpush.msra.mxu0 0.0
  %1120 = vmatpush.msra.mxu0 0.0
  %1121 = vmatpush.msra.mxu0 0.0
  %1122 = vmatpush.msra.mxu0 0.0
  %1123 = vmatpush.msra.mxu0 0.0
  %1124 = vmatpush.msra.mxu0 0.0
  %1125 = vmatpush.msra.mxu0 0.0
  %1126 = vmatpush.msra.mxu0 %v755
  %1127 = vmatpush.msra.mxu0 %v754
  %1128 = vmatpush.msra.mxu0 %v753
  %1129 = vmatpush.msra.mxu0 %v752
  %1130 = vmatmul.f32.gmra.mxu0 %v1112
  %v1131 = vpop.f32.mrf.mxu0
  %v1132 = vadd.f32 0.0, %v1131
  %1133 = vdwg.mxu0
  %v1134 = vadd.f32 %v838, %v1132
  %v1135 = vxor.u32 %v1134, 2147483648
  %v1136 = vmul.f32 %v1135, 1.442695
  %v1137 = vpow.pop %v1136
  %v1138 = vadd.f32 %v1137, 1.0
  %v1139 = vrcp.pop %v1138
  %v1140 = vmul.f32 %v1138, %v1139
  %v1141 = vsub.f32 1.0, %v1140
  %v1142 = vmul.f32 %v1139, %v1141
  %v1143 = vadd.f32 %v1139, %v1142
  %vm1144 = vweird.f32 %v1138
  %vm1145 = vweird.f32 %v1139
  %vm1146 = vmor %vm1144, %vm1145
  %v1147 = vsel %vm1146, %v1139, %v1143
  %v1148 = vand.u32 2147483647, %v1138
  %vm1149 = vcmp.eq.f32.partialorder %v1148, 8.507059e+37
  %v1150 = vand.u32 %v1138, 2147483648
  %v1151 = vor.u32 1.1754944e-38, %v1150
  %v1152 = vsel %vm1149, %v1151, %v1147
  %v1153 = vmul.f32 1.0, %v1152
  %v1154 = vtanh.pop %v1134
  %v1155 = vmul.f32 %v1153, %v1102
  %1157 = vrot.lane.b32.xlu0 %v1154, 64
  %v1158 = vpop.permute.xlu0 %1157
  %v1160 = vmul.f32 %v1153, %v1158
  %1162 = vrot.lane.b32.xlu0 %v1160, 32
  %v1163 = vpop.permute.xlu0 %1162
  %v1165 = vadd.f32 %v1155, %v1163
  %v1166 = vtanh.pop %v1165
  %1168 = vrot.lane.b32.xlu0 %v1166, 64
  %v1169 = vpop.permute.xlu0 %1168
  %v1171 = vmul.f32 %v1153, %v1169
  %1173 = vrot.lane.b32.xlu0 %v1171, 32
  %v1174 = vpop.permute.xlu0 %1173
  %v1175 = vsel %vm245, %v1174, 0
  %1177 = vmatpush.msra.mxu0 0.0
  %1178 = vmatpush.msra.mxu0 0.0
  %1179 = vmatpush.msra.mxu0 0.0
  %1180 = vmatpush.msra.mxu0 0.0
  %1181 = vmatpush.msra.mxu0 0.0
  %1182 = vmatpush.msra.mxu0 0.0
  %1183 = vmatpush.msra.mxu0 0.0
  %1184 = vmatpush.msra.mxu0 0.0
  %1185 = vmatpush.msra.mxu0 0.0
  %1186 = vmatpush.msra.mxu0 0.0
  %1187 = vmatpush.msra.mxu0 0.0
  %1188 = vmatpush.msra.mxu0 0.0
  %1189 = vmatpush.msra.mxu0 %v755
  %1190 = vmatpush.msra.mxu0 %v754
  %1191 = vmatpush.msra.mxu0 %v753
  %1192 = vmatpush.msra.mxu0 %v752
  %1193 = vmatmul.f32.gmra.mxu0 %v1175
  %v1194 = vpop.f32.mrf.mxu0
  %v1195 = vadd.f32 0.0, %v1194
  %1196 = vdwg.mxu0
  %v1197 = vadd.f32 %v858, %v1195
  %v1198 = vxor.u32 %v1197, 2147483648
  %v1199 = vmul.f32 %v1198, 1.442695
  %v1200 = vpow.pop %v1199
  %v1201 = vadd.f32 %v1200, 1.0
  %v1202 = vrcp.pop %v1201
  %v1203 = vmul.f32 %v1201, %v1202
  %v1204 = vsub.f32 1.0, %v1203
  %v1205 = vmul.f32 %v1202, %v1204
  %v1206 = vadd.f32 %v1202, %v1205
  %vm1207 = vweird.f32 %v1201
  %vm1208 = vweird.f32 %v1202
  %vm1209 = vmor %vm1207, %vm1208
  %v1210 = vsel %vm1209, %v1202, %v1206
  %v1211 = vand.u32 2147483647, %v1201
  %vm1212 = vcmp.eq.f32.partialorder %v1211, 8.507059e+37
  %v1213 = vand.u32 %v1201, 2147483648
  %v1214 = vor.u32 1.1754944e-38, %v1213
  %v1215 = vsel %vm1212, %v1214, %v1210
  %v1216 = vmul.f32 1.0, %v1215
  %v1217 = vtanh.pop %v1197
  %v1218 = vmul.f32 %v1216, %v1165
  %1220 = vrot.lane.b32.xlu0 %v1217, 64
  %v1221 = vpop.permute.xlu0 %1220
  %v1223 = vmul.f32 %v1216, %v1221
  %1225 = vrot.lane.b32.xlu0 %v1223, 32
  %v1226 = vpop.permute.xlu0 %1225
  %v1228 = vadd.f32 %v1218, %v1226
  %v1229 = vtanh.pop %v1228
  %1231 = vrot.lane.b32.xlu0 %v1229, 64
  %v1232 = vpop.permute.xlu0 %1231
  %v1234 = vmul.f32 %v1216, %v1232
  %1236 = vrot.lane.b32.xlu0 %v1234, 32
  %v1237 = vpop.permute.xlu0 %1236
  %v1238 = vsel %vm245, %v1237, 0
  %1240 = vmatpush.msra.mxu0 0.0
  %1241 = vmatpush.msra.mxu0 0.0
  %1242 = vmatpush.msra.mxu0 0.0
  %1243 = vmatpush.msra.mxu0 0.0
  %1244 = vmatpush.msra.mxu0 0.0
  %1245 = vmatpush.msra.mxu0 0.0
  %1246 = vmatpush.msra.mxu0 0.0
  %1247 = vmatpush.msra.mxu0 0.0
  %1248 = vmatpush.msra.mxu0 0.0
  %1249 = vmatpush.msra.mxu0 0.0
  %1250 = vmatpush.msra.mxu0 0.0
  %1251 = vmatpush.msra.mxu0 0.0
  %1252 = vmatpush.msra.mxu0 %v755
  %1253 = vmatpush.msra.mxu0 %v754
  %1254 = vmatpush.msra.mxu0 %v753
  %1255 = vmatpush.msra.mxu0 %v752
  %1256 = vmatmul.f32.gmra.mxu0 %v1238
  %v1257 = vpop.f32.mrf.mxu0
  %v1258 = vadd.f32 0.0, %v1257
  %1259 = vdwg.mxu0
  %v1260 = vadd.f32 %v878, %v1258
  %v1261 = vxor.u32 %v1260, 2147483648
  %v1262 = vmul.f32 %v1261, 1.442695
  %v1263 = vpow.pop %v1262
  %v1264 = vadd.f32 %v1263, 1.0
  %v1265 = vrcp.pop %v1264
  %v1266 = vmul.f32 %v1264, %v1265
  %v1267 = vsub.f32 1.0, %v1266
  %v1268 = vmul.f32 %v1265, %v1267
  %v1269 = vadd.f32 %v1265, %v1268
  %vm1270 = vweird.f32 %v1264
  %vm1271 = vweird.f32 %v1265
  %vm1272 = vmor %vm1270, %vm1271
  %v1273 = vsel %vm1272, %v1265, %v1269
  %v1274 = vand.u32 2147483647, %v1264
  %vm1275 = vcmp.eq.f32.partialorder %v1274, 8.507059e+37
  %v1276 = vand.u32 %v1264, 2147483648
  %v1277 = vor.u32 1.1754944e-38, %v1276
  %v1278 = vsel %vm1275, %v1277, %v1273
  %v1279 = vmul.f32 1.0, %v1278
  %v1280 = vtanh.pop %v1260
  %v1281 = vmul.f32 %v1279, %v1228
  %1283 = vrot.lane.b32.xlu0 %v1280, 64
  %v1284 = vpop.permute.xlu0 %1283
  %v1286 = vmul.f32 %v1279, %v1284
  %1288 = vrot.lane.b32.xlu0 %v1286, 32
  %v1289 = vpop.permute.xlu0 %1288
  %v1291 = vadd.f32 %v1281, %v1289
  %v1292 = vtanh.pop %v1291
  %1294 = vrot.lane.b32.xlu0 %v1292, 64
  %v1295 = vpop.permute.xlu0 %1294
  %v1297 = vmul.f32 %v1279, %v1295
  %1299 = vrot.lane.b32.xlu0 %v1297, 32
  %v1300 = vpop.permute.xlu0 %1299
  %v1301 = vsel %vm245, %v1300, 0
  %1303 = vmatpush.msra.mxu0 0.0
  %1304 = vmatpush.msra.mxu0 0.0
  %1305 = vmatpush.msra.mxu0 0.0
  %1306 = vmatpush.msra.mxu0 0.0
  %1307 = vmatpush.msra.mxu0 0.0
  %1308 = vmatpush.msra.mxu0 0.0
  %1309 = vmatpush.msra.mxu0 0.0
  %1310 = vmatpush.msra.mxu0 0.0
  %1311 = vmatpush.msra.mxu0 0.0
  %1312 = vmatpush.msra.mxu0 0.0
  %1313 = vmatpush.msra.mxu0 0.0
  %1314 = vmatpush.msra.mxu0 0.0
  %1315 = vmatpush.msra.mxu0 %v755
  %1316 = vmatpush.msra.mxu0 %v754
  %1317 = vmatpush.msra.mxu0 %v753
  %1318 = vmatpush.msra.mxu0 %v752
  %1319 = vmatmul.f32.gmra.mxu0 %v1301
  %v1320 = vpop.f32.mrf.mxu0
  %v1321 = vadd.f32 0.0, %v1320
  %1322 = vdwg.mxu0
  %v1323 = vadd.f32 %v898, %v1321
  %v1324 = vxor.u32 %v1323, 2147483648
  %v1325 = vmul.f32 %v1324, 1.442695
  %v1326 = vpow.pop %v1325
  %v1327 = vadd.f32 %v1326, 1.0
  %v1328 = vrcp.pop %v1327
  %v1329 = vmul.f32 %v1327, %v1328
  %v1330 = vsub.f32 1.0, %v1329
  %v1331 = vmul.f32 %v1328, %v1330
  %v1332 = vadd.f32 %v1328, %v1331
  %vm1333 = vweird.f32 %v1327
  %vm1334 = vweird.f32 %v1328
  %vm1335 = vmor %vm1333, %vm1334
  %v1336 = vsel %vm1335, %v1328, %v1332
  %v1337 = vand.u32 2147483647, %v1327
  %vm1338 = vcmp.eq.f32.partialorder %v1337, 8.507059e+37
  %v1339 = vand.u32 %v1327, 2147483648
  %v1340 = vor.u32 1.1754944e-38, %v1339
  %v1341 = vsel %vm1338, %v1340, %v1336
  %v1342 = vmul.f32 1.0, %v1341
  %v1343 = vtanh.pop %v1323
  %v1344 = vmul.f32 %v1342, %v1291
  %1346 = vrot.lane.b32.xlu0 %v1343, 64
  %v1347 = vpop.permute.xlu0 %1346
  %v1349 = vmul.f32 %v1342, %v1347
  %1351 = vrot.lane.b32.xlu0 %v1349, 32
  %v1352 = vpop.permute.xlu0 %1351
  %v1354 = vadd.f32 %v1344, %v1352
  %v1355 = vtanh.pop %v1354
  %1357 = vrot.lane.b32.xlu0 %v1355, 64
  %v1358 = vpop.permute.xlu0 %1357
  %v1360 = vmul.f32 %v1342, %v1358
  %1362 = vrot.lane.b32.xlu0 %v1360, 32
  %v1363 = vpop.permute.xlu0 %1362
  %v1364 = vsel %vm245, %v1363, 0
  %1366 = vmatpush.msra.mxu0 0.0
  %1367 = vmatpush.msra.mxu0 0.0
  %1368 = vmatpush.msra.mxu0 0.0
  %1369 = vmatpush.msra.mxu0 0.0
  %1370 = vmatpush.msra.mxu0 0.0
  %1371 = vmatpush.msra.mxu0 0.0
  %1372 = vmatpush.msra.mxu0 0.0
  %1373 = vmatpush.msra.mxu0 0.0
  %1374 = vmatpush.msra.mxu0 0.0
  %1375 = vmatpush.msra.mxu0 0.0
  %1376 = vmatpush.msra.mxu0 0.0
  %1377 = vmatpush.msra.mxu0 0.0
  %1378 = vmatpush.msra.mxu0 %v755
  %1379 = vmatpush.msra.mxu0 %v754
  %1380 = vmatpush.msra.mxu0 %v753
  %1381 = vmatpush.msra.mxu0 %v752
  %1382 = vmatmul.f32.gmra.mxu0 %v1364
  %v1383 = vpop.f32.mrf.mxu0
  %v1384 = vadd.f32 0.0, %v1383
  %1385 = vdwg.mxu0
  %v1386 = vadd.f32 %v923, %v1384
  %v1387 = vxor.u32 %v1386, 2147483648
  %v1388 = vmul.f32 %v1387, 1.442695
  %v1389 = vpow.pop %v1388
  %v1390 = vadd.f32 %v1389, 1.0
  %v1391 = vrcp.pop %v1390
  %v1392 = vmul.f32 %v1390, %v1391
  %v1393 = vsub.f32 1.0, %v1392
  %v1394 = vmul.f32 %v1391, %v1393
  %v1395 = vadd.f32 %v1391, %v1394
  %vm1396 = vweird.f32 %v1390
  %vm1397 = vweird.f32 %v1391
  %vm1398 = vmor %vm1396, %vm1397
  %v1399 = vsel %vm1398, %v1391, %v1395
  %v1400 = vand.u32 2147483647, %v1390
  %vm1401 = vcmp.eq.f32.partialorder %v1400, 8.507059e+37
  %v1402 = vand.u32 %v1390, 2147483648
  %v1403 = vor.u32 1.1754944e-38, %v1402
  %v1404 = vsel %vm1401, %v1403, %v1399
  %v1405 = vmul.f32 1.0, %v1404
  %v1406 = vtanh.pop %v1386
  %v1407 = vmul.f32 %v1405, %v1354
  %1409 = vrot.lane.b32.xlu0 %v1406, 64
  %v1410 = vpop.permute.xlu0 %1409
  %v1412 = vmul.f32 %v1405, %v1410
  %1414 = vrot.lane.b32.xlu0 %v1412, 32
  %v1415 = vpop.permute.xlu0 %1414
  %v1417 = vadd.f32 %v1407, %v1415
  %v1418 = vtanh.pop %v1417
  %1420 = vrot.lane.b32.xlu0 %v1418, 64
  %v1421 = vpop.permute.xlu0 %1420
  %v1423 = vmul.f32 %v1405, %v1421
  %v1424 = vld [vmem:[%s7] sm:$0xff]
  %v1425 = vld [vmem:[%s7 + $0x8] sm:$0xff]
  %v1426 = vld [vmem:[%s7 + $0x10] sm:$0xff]
  %v1427 = vld [vmem:[%s7 + $0x18] sm:$0xff]
  %s1428 = scalar_lea.vmem %s7, 32
  %v1429 = vld [vmem:[%s1428] sm:$0xff]
  %v1430 = vld [vmem:[%s1428 + $0x8] sm:$0xff]
  %v1431 = vld [vmem:[%s1428 + $0x10] sm:$0xff]
  %v1432 = vld [vmem:[%s1428 + $0x18] sm:$0xff]
  %1433 = vmatpush.msra.mxu0 0.0
  %1434 = vmatpush.msra.mxu0 0.0
  %1435 = vmatpush.msra.mxu0 0.0
  %1436 = vmatpush.msra.mxu0 0.0
  %1437 = vmatpush.msra.mxu0 0.0
  %1438 = vmatpush.msra.mxu0 0.0
  %1439 = vmatpush.msra.mxu0 0.0
  %1440 = vmatpush.msra.mxu0 0.0
  %1441 = vmatpush.msra.mxu0 0.0
  %1442 = vmatpush.msra.mxu0 0.0
  %1443 = vmatpush.msra.mxu0 0.0
  %1444 = vmatpush.msra.mxu0 0.0
  %1445 = vmatpush.msra.mxu0 %v1432
  %1446 = vmatpush.msra.mxu0 %v1431
  %1447 = vmatpush.msra.mxu0 %v1430
  %1448 = vmatpush.msra.mxu0 %v1429
  %1449 = vmatmul.f32.gmra.mxu0 %v1049
  %v1450 = vpop.f32.mrf.mxu0
  %v1451 = vadd.f32 0.0, %v1450
  %1452 = vdwg.mxu0
  %1453 = vmatpush.msra.mxu0 0.0
  %1454 = vmatpush.msra.mxu0 0.0
  %1455 = vmatpush.msra.mxu0 0.0
  %1456 = vmatpush.msra.mxu0 0.0
  %1457 = vmatpush.msra.mxu0 0.0
  %1458 = vmatpush.msra.mxu0 0.0
  %1459 = vmatpush.msra.mxu0 0.0
  %1460 = vmatpush.msra.mxu0 0.0
  %1461 = vmatpush.msra.mxu0 0.0
  %1462 = vmatpush.msra.mxu0 0.0
  %1463 = vmatpush.msra.mxu0 0.0
  %1464 = vmatpush.msra.mxu0 0.0
  %1465 = vmatpush.msra.mxu0 %v1427
  %1466 = vmatpush.msra.mxu0 %v1426
  %1467 = vmatpush.msra.mxu0 %v1425
  %1468 = vmatpush.msra.mxu0 %v1424
  %1469 = vmatmul.f32.gmra.mxu0 %v986
  %v1470 = vpop.f32.mrf.mxu0
  %v1471 = vadd.f32 %v1451, %v1470
  %1472 = vdwg.mxu0
  %s1473 = scalar_lea.vmem %s7, 64
  %v1474 = vld [vmem:[%s1473] sm:$0xff]
  %v1475 = vld [vmem:[%s1473 + $0x8] sm:$0xff]
  %v1476 = vld [vmem:[%s1473 + $0x10] sm:$0xff]
  %v1477 = vld [vmem:[%s1473 + $0x18] sm:$0xff]
  %1478 = vmatpush.msra.mxu0 0.0
  %1479 = vmatpush.msra.mxu0 0.0
  %1480 = vmatpush.msra.mxu0 0.0
  %1481 = vmatpush.msra.mxu0 0.0
  %1482 = vmatpush.msra.mxu0 0.0
  %1483 = vmatpush.msra.mxu0 0.0
  %1484 = vmatpush.msra.mxu0 0.0
  %1485 = vmatpush.msra.mxu0 0.0
  %1486 = vmatpush.msra.mxu0 0.0
  %1487 = vmatpush.msra.mxu0 0.0
  %1488 = vmatpush.msra.mxu0 0.0
  %1489 = vmatpush.msra.mxu0 0.0
  %1490 = vmatpush.msra.mxu0 %v1477
  %1491 = vmatpush.msra.mxu0 %v1476
  %1492 = vmatpush.msra.mxu0 %v1475
  %1493 = vmatpush.msra.mxu0 %v1474
  %1494 = vmatmul.f32.gmra.mxu0 %v1112
  %v1495 = vpop.f32.mrf.mxu0
  %v1496 = vadd.f32 0.0, %v1495
  %1497 = vdwg.mxu0
  %v1498 = vadd.f32 %v1471, %v1496
  %s1499 = scalar_lea.vmem %s7, 96
  %v1500 = vld [vmem:[%s1499] sm:$0xff]
  %v1501 = vld [vmem:[%s1499 + $0x8] sm:$0xff]
  %v1502 = vld [vmem:[%s1499 + $0x10] sm:$0xff]
  %v1503 = vld [vmem:[%s1499 + $0x18] sm:$0xff]
  %1504 = vmatpush.msra.mxu0 0.0
  %1505 = vmatpush.msra.mxu0 0.0
  %1506 = vmatpush.msra.mxu0 0.0
  %1507 = vmatpush.msra.mxu0 0.0
  %1508 = vmatpush.msra.mxu0 0.0
  %1509 = vmatpush.msra.mxu0 0.0
  %1510 = vmatpush.msra.mxu0 0.0
  %1511 = vmatpush.msra.mxu0 0.0
  %1512 = vmatpush.msra.mxu0 0.0
  %1513 = vmatpush.msra.mxu0 0.0
  %1514 = vmatpush.msra.mxu0 0.0
  %1515 = vmatpush.msra.mxu0 0.0
  %1516 = vmatpush.msra.mxu0 %v1503
  %1517 = vmatpush.msra.mxu0 %v1502
  %1518 = vmatpush.msra.mxu0 %v1501
  %1519 = vmatpush.msra.mxu0 %v1500
  %1520 = vmatmul.f32.gmra.mxu0 %v1175
  %v1521 = vpop.f32.mrf.mxu0
  %v1522 = vadd.f32 0.0, %v1521
  %1523 = vdwg.mxu0
  %v1524 = vadd.f32 %v1498, %v1522
  %s1525 = scalar_lea.vmem %s7, 128
  %v1526 = vld [vmem:[%s1525] sm:$0xff]
  %v1527 = vld [vmem:[%s1525 + $0x8] sm:$0xff]
  %v1528 = vld [vmem:[%s1525 + $0x10] sm:$0xff]
  %v1529 = vld [vmem:[%s1525 + $0x18] sm:$0xff]
  %1530 = vmatpush.msra.mxu0 0.0
  %1531 = vmatpush.msra.mxu0 0.0
  %1532 = vmatpush.msra.mxu0 0.0
  %1533 = vmatpush.msra.mxu0 0.0
  %1534 = vmatpush.msra.mxu0 0.0
  %1535 = vmatpush.msra.mxu0 0.0
  %1536 = vmatpush.msra.mxu0 0.0
  %1537 = vmatpush.msra.mxu0 0.0
  %1538 = vmatpush.msra.mxu0 0.0
  %1539 = vmatpush.msra.mxu0 0.0
  %1540 = vmatpush.msra.mxu0 0.0
  %1541 = vmatpush.msra.mxu0 0.0
  %1542 = vmatpush.msra.mxu0 %v1529
  %1543 = vmatpush.msra.mxu0 %v1528
  %1544 = vmatpush.msra.mxu0 %v1527
  %1545 = vmatpush.msra.mxu0 %v1526
  %1546 = vmatmul.f32.gmra.mxu0 %v1238
  %v1547 = vpop.f32.mrf.mxu0
  %v1548 = vadd.f32 0.0, %v1547
  %1549 = vdwg.mxu0
  %v1550 = vadd.f32 %v1524, %v1548
  %s1551 = scalar_lea.vmem %s7, 160
  %v1552 = vld [vmem:[%s1551] sm:$0xff]
  %v1553 = vld [vmem:[%s1551 + $0x8] sm:$0xff]
  %v1554 = vld [vmem:[%s1551 + $0x10] sm:$0xff]
  %v1555 = vld [vmem:[%s1551 + $0x18] sm:$0xff]
  %1556 = vmatpush.msra.mxu0 0.0
  %1557 = vmatpush.msra.mxu0 0.0
  %1558 = vmatpush.msra.mxu0 0.0
  %1559 = vmatpush.msra.mxu0 0.0
  %1560 = vmatpush.msra.mxu0 0.0
  %1561 = vmatpush.msra.mxu0 0.0
  %1562 = vmatpush.msra.mxu0 0.0
  %1563 = vmatpush.msra.mxu0 0.0
  %1564 = vmatpush.msra.mxu0 0.0
  %1565 = vmatpush.msra.mxu0 0.0
  %1566 = vmatpush.msra.mxu0 0.0
  %1567 = vmatpush.msra.mxu0 0.0
  %1568 = vmatpush.msra.mxu0 %v1555
  %1569 = vmatpush.msra.mxu0 %v1554
  %1570 = vmatpush.msra.mxu0 %v1553
  %1571 = vmatpush.msra.mxu0 %v1552
  %1572 = vmatmul.f32.gmra.mxu0 %v1301
  %v1573 = vpop.f32.mrf.mxu0
  %v1574 = vadd.f32 0.0, %v1573
  %1575 = vdwg.mxu0
  %v1576 = vadd.f32 %v1550, %v1574
  %s1577 = scalar_lea.vmem %s7, 192
  %v1578 = vld [vmem:[%s1577] sm:$0xff]
  %v1579 = vld [vmem:[%s1577 + $0x8] sm:$0xff]
  %v1580 = vld [vmem:[%s1577 + $0x10] sm:$0xff]
  %v1581 = vld [vmem:[%s1577 + $0x18] sm:$0xff]
  %1582 = vmatpush.msra.mxu0 0.0
  %1583 = vmatpush.msra.mxu0 0.0
  %1584 = vmatpush.msra.mxu0 0.0
  %1585 = vmatpush.msra.mxu0 0.0
  %1586 = vmatpush.msra.mxu0 0.0
  %1587 = vmatpush.msra.mxu0 0.0
  %1588 = vmatpush.msra.mxu0 0.0
  %1589 = vmatpush.msra.mxu0 0.0
  %1590 = vmatpush.msra.mxu0 0.0
  %1591 = vmatpush.msra.mxu0 0.0
  %1592 = vmatpush.msra.mxu0 0.0
  %1593 = vmatpush.msra.mxu0 0.0
  %1594 = vmatpush.msra.mxu0 %v1581
  %1595 = vmatpush.msra.mxu0 %v1580
  %1596 = vmatpush.msra.mxu0 %v1579
  %1597 = vmatpush.msra.mxu0 %v1578
  %1598 = vmatmul.f32.gmra.mxu0 %v1364
  %v1599 = vpop.f32.mrf.mxu0
  %v1600 = vadd.f32 0.0, %v1599
  %1601 = vdwg.mxu0
  %v1602 = vadd.f32 %v1576, %v1600
  %s1603 = scalar_lea.vmem %s7, 224
  %v1604 = vld [vmem:[%s1603] sm:$0xff]
  %v1605 = vld [vmem:[%s1603 + $0x8] sm:$0xff]
  %v1606 = vld [vmem:[%s1603 + $0x10] sm:$0xff]
  %v1607 = vld [vmem:[%s1603 + $0x18] sm:$0xff]
  %1609 = vrot.lane.b32.xlu0 %v1423, 32
  %v1610 = vpop.permute.xlu0 %1609
  %v1611 = vsel %vm245, %v1610, 0
  %1613 = vmatpush.msra.mxu0 0.0
  %1614 = vmatpush.msra.mxu0 0.0
  %1615 = vmatpush.msra.mxu0 0.0
  %1616 = vmatpush.msra.mxu0 0.0
  %1617 = vmatpush.msra.mxu0 0.0
  %1618 = vmatpush.msra.mxu0 0.0
  %1619 = vmatpush.msra.mxu0 0.0
  %1620 = vmatpush.msra.mxu0 0.0
  %1621 = vmatpush.msra.mxu0 0.0
  %1622 = vmatpush.msra.mxu0 0.0
  %1623 = vmatpush.msra.mxu0 0.0
  %1624 = vmatpush.msra.mxu0 0.0
  %1625 = vmatpush.msra.mxu0 %v1607
  %1626 = vmatpush.msra.mxu0 %v1606
  %1627 = vmatpush.msra.mxu0 %v1605
  %1628 = vmatpush.msra.mxu0 %v1604
  %1629 = vmatmul.f32.gmra.mxu0 %v1611
  %v1630 = vpop.f32.mrf.mxu0
  %v1631 = vadd.f32 0.0, %v1630
  %1632 = vdwg.mxu0
  %v1633 = vadd.f32 %v1602, %v1631
  %v1634 = vld [vmem:[%s8] sm:$0x1]
  %v1636 = vperm.slane %v1634, 0
  %v1638 = vadd.f32 %v1633, %v1636
  %1639 = vst.msk [vmem:[%s9] sm:$0xff] %vm245, %v1638
  // Predicated region
  $region38: #{lstmad_forward.1} parent=0 // pred_check
    _
  $region39: #{lstmad_forward.1} parent=0 // pred_check_branch
    %1641 = sbr.rel (0) target = $region41
  $region40: #{lstmad_forward.1} parent=0 // pred_region
    _
  $region41: #{lstmad_forward.1} parent=0 // pred_fallthru
    _
  // Predicated region
  $region42: #{lstmad_forward.1} parent=0 // pred_check
    _
  $region43: #{lstmad_forward.1} parent=0 // pred_check_branch
    %1643 = sbr.rel (0) target = $region45
  $region44: #{lstmad_forward.1} parent=0 // pred_region
    _
  $region45: #{lstmad_forward.1} parent=0 // pred_fallthru
    _

</llo_original>
